<compile_context>
chip_gen: v7x
topology: tpu7x:2x2x1
jax: 0.10.0
libtpu: 0.0.40
codegen_flags: <defaults>
</compile_context>

<pallas_src>
import functools
import math

import jax
import jax.numpy as jnp
from jax import lax
from jax.experimental import pallas as pl
from jax.experimental.pallas import tpu as pltpu

_INV_SQRT2 = 1.0 / math.sqrt(2.0)
_BN_EPS = 1e-5


def _gelu_exact(x):
    # exact (erf-based) GELU, matching torch.nn.GELU() default
    return 0.5 * x * (1.0 + lax.erf(x * _INV_SQRT2))


def _fold_w(row, c, wc):
    """Per-channel reduction over the w-groups of the lane dimension.

    row: (1, wc) f32 with lane index = w*c + channel.  Returns (1, wc) where every lane
    holds the sum over all w positions of its channel (already broadcast back over w).
    Uses a log-tree of circular lane rolls (XLU); requires wc // c to be a power of two."""
    shift = c
    while shift < wc:
        row = row + pltpu.roll(row, shift, axis=1)
        shift *= 2
    return row


# ---------------------------------------------------------------------------
# The single fused kernel.
# ---------------------------------------------------------------------------
def _unet_up_kernel(x_ref, mt_ref, bt_ref, mw_ref, bw_ref, g_ref, be_ref, o_ref,
                    *, n_layers, h_img, c_out, inv_count):
    M = o_ref.shape[0]
    WC = o_ref.shape[1]

    row_id = lax.broadcasted_iota(jnp.int32, (M, WC), 0)
    row_in_img = row_id % h_img
    zero_row = jnp.zeros((1, WC), jnp.float32)

    # --- ConvTranspose2d(kernel=2, stride=2) ---
    # x_ref already has one row per OUTPUT row (each input row repeated twice); even output
    # rows use the kh=0 weight plane, odd rows the kh=1 plane.  Lane dim stays W1*Cout.
    xr = x_ref[...].astype(jnp.bfloat16)
    p_even = jnp.dot(xr, mt_ref[0], preferred_element_type=jnp.float32)
    p_odd = jnp.dot(xr, mt_ref[1], preferred_element_type=jnp.float32)
    act = jnp.where(row_id % 2 == 0, p_even, p_odd) + bt_ref[...]

    # --- 4 x (Conv3x3 -> BatchNorm2d(train) -> GELU), all VMEM/register resident ---
    for l in range(n_layers):
        xb = act.astype(jnp.bfloat16)
        # one fat matmul against the N-fused band RHS: output columns [kh=0 | kh=1 | kh=2]
        y3 = jnp.dot(xb, mw_ref[l], preferred_element_type=jnp.float32)     # (M, 3*WC)
        q0 = y3[:, 0:WC]
        q1 = y3[:, WC:2 * WC]
        q2 = y3[:, 2 * WC:3 * WC]
        # kh row shifts on the f32 OUTPUT side; mask image-boundary rows so the batch
        # folding (N in the row dim) does not leak rows across images.
        sd = jnp.concatenate([zero_row, q0[:-1, :]], axis=0)   # sd[r] = q0[r-1]
        sd = jnp.where(row_in_img == 0, 0.0, sd)
        su = jnp.concatenate([q2[1:, :], zero_row], axis=0)    # su[r] = q2[r+1]
        su = jnp.where(row_in_img == h_img - 1, 0.0, su)
        y = sd + q1 + su + bw_ref[l]                           # raw conv output (M, WC)

        # BatchNorm training statistics over (N, H, W), two-pass for numerical stability.
        s1 = jnp.sum(y, axis=0, keepdims=True)                 # (1, WC) per (w, c) column
        mean = _fold_w(s1, c_out, WC) * inv_count              # per-channel, bcast over w
        d = y - mean
        s2 = jnp.sum(d * d, axis=0, keepdims=True)
        var = _fold_w(s2, c_out, WC) * inv_count
        scale = g_ref[l] * lax.rsqrt(var + _BN_EPS)
        act = _gelu_exact(d * scale + be_ref[l])

    o_ref[...] = act


# ---------------------------------------------------------------------------
# Weight -> matmul-matrix builders (hoisted: run once per weight update, not per forward).
# ---------------------------------------------------------------------------
def _convt_matrices(w_t, W0):
    """torch ConvTranspose2d weight (Cin, Cout, 2, 2) -> (2, W0*Cin, 2*W0*Cout) bf16,
    one matrix per output-row parity kh; the w upsampling (w_out = 2*w_in + kw) is folded in."""
    Cin, Cout = w_t.shape[0], w_t.shape[1]
    W1 = 2 * W0
    RK, CN = W0 * Cin, W1 * Cout
    r = jnp.arange(RK)
    w_in, ci = r // Cin, r % Cin
    c = jnp.arange(CN)
    w_out, co = c // Cout, c % Cout
    kw = w_out[None, :] - 2 * w_in[:, None]                    # valid kw in {0, 1}
    valid = (kw >= 0) & (kw <= 1)
    kwc = jnp.clip(kw, 0, 1)
    vals = w_t[ci[:, None], co[None, :], :, kwc]               # (RK, CN, 2)  [kh last]
    m = jnp.where(valid[:, :, None], vals, 0.0)
    return jnp.transpose(m, (2, 0, 1)).astype(jnp.bfloat16)    # (2, RK, CN)


def _band_matrix_fused(w_c, W):
    """torch Conv2d weight (Cout, Cin, 3, 3) -> (W*Cin, 3*W*Cout) bf16: the three kh
    block-banded matrices (kw shift + w zero padding folded in) fused along the columns."""
    Cout, Cin = w_c.shape[0], w_c.shape[1]
    RK, CN = W * Cin, W * Cout
    r = jnp.arange(RK)
    wp, ci = r // Cin, r % Cin
    c = jnp.arange(CN)
    w, co = c // Cout, c % Cout
    kwi = wp[:, None] - w[None, :] + 1                         # kw index, valid in [0, 2]
    valid = (kwi >= 0) & (kwi <= 2)
    kwc = jnp.clip(kwi, 0, 2)
    m = w_c[co[None, :], ci[:, None], :, kwc]                  # (RK, CN, 3)  [kh last]
    m = jnp.where(valid[:, :, None], m, 0.0)
    m = jnp.transpose(m, (0, 2, 1)).reshape(RK, 3 * CN)        # columns [kh0 | kh1 | kh2]
    return m.astype(jnp.bfloat16)


def prepare_params(params, W0):
    """One-time conversion of torch-layout weights into the lane-dense matmul operands
    consumed by the fused kernel (do NOT call this inside the per-step forward)."""
    Cout = params["convt_b"].shape[0]
    W1 = 2 * W0
    WC = W1 * Cout
    mt = _convt_matrices(params["convt_w"], W0)
    bt = jnp.tile(params["convt_b"], W1).reshape(1, WC)
    mw, bw, ga, be = [], [], [], []
    for blk in ("res1", "res2"):
        for cv in ("c1", "c2"):
            p = params[blk][cv]
            mw.append(_band_matrix_fused(p["w"], W1))
            bw.append(jnp.tile(p["b"], W1).reshape(1, WC))
            ga.append(jnp.tile(p["gamma"], W1).reshape(1, WC))
            be.append(jnp.tile(p["beta"], W1).reshape(1, WC))
    return dict(mt=mt, bt=bt, mw=jnp.stack(mw), bw=jnp.stack(bw),
                gamma=jnp.stack(ga), beta=jnp.stack(be))


# ---------------------------------------------------------------------------
# UnetUp forward: cat(x, skip) -> ConvTranspose2d(2,2) -> 2x ResidualConvBlock (is_res=False).
# ---------------------------------------------------------------------------
def unet_up_forward(prepared, x_nchw, skip_nchw):
    x = jnp.concatenate([x_nchw, skip_nchw], axis=1)                 # (N, Cin, H0, W0)
    N, Cin, H0, W0 = x.shape
    H1, W1 = 2 * H0, 2 * W0
    WC = prepared["bt"].shape[1]
    Cout = WC // W1
    M = N * H1
    assert (W1 & (W1 - 1)) == 0, "lane-roll BN reduction needs W1 to be a power of two"

    # lane-dense layout (lane = w*Cin + ci); one row per ConvTranspose OUTPUT row.
    xr = jnp.transpose(x, (0, 2, 3, 1)).reshape(N * H0, W0 * Cin)
    x_rep = jnp.repeat(xr, 2, axis=0)                                # (N*H1, W0*Cin)

    kern = functools.partial(
        _unet_up_kernel,
        n_layers=prepared["mw"].shape[0],
        h_img=H1, c_out=Cout,
        inv_count=1.0 / float(N * H1 * W1))
    out = pl.pallas_call(
        kern,
        out_shape=jax.ShapeDtypeStruct((M, WC), jnp.float32),
    )(x_rep, prepared["mt"], prepared["bt"], prepared["mw"],
      prepared["bw"], prepared["gamma"], prepared["beta"])

    out = out.reshape(N, H1, W1, Cout)
    return jnp.transpose(out, (0, 3, 1, 2))                          # back to NCHW


# ---------------------------------------------------------------------------
# Deterministic synthetic parameters (shapes per the PyTorch __init__)
# ---------------------------------------------------------------------------
def _conv_bn_params(key, c):
    kw, kb, kg, kbe = jax.random.split(key, 4)
    return dict(
        w=0.1 * jax.random.normal(kw, (c, c, 3, 3), jnp.float32),
        b=0.05 * jax.random.normal(kb, (c,), jnp.float32),
        gamma=1.0 + 0.1 * jax.random.normal(kg, (c,), jnp.float32),
        beta=0.1 * jax.random.normal(kbe, (c,), jnp.float32),
    )


def init_params(key, in_ch, out_ch):
    k = jax.random.split(key, 6)
    return dict(
        convt_w=0.1 * jax.random.normal(k[0], (in_ch, out_ch, 2, 2), jnp.float32),
        convt_b=0.05 * jax.random.normal(k[1], (out_ch,), jnp.float32),
        res1=dict(c1=_conv_bn_params(k[2], out_ch), c2=_conv_bn_params(k[3], out_ch)),
        res2=dict(c1=_conv_bn_params(k[4], out_ch), c2=_conv_bn_params(k[5], out_ch)),
    )


# ---------------------------------------------------------------------------
# Pure-JAX reference with matching matmul precision (bf16 operands, f32 accumulation)
# ---------------------------------------------------------------------------
def _ref_forward(params, x_nchw, skip_nchw):
    x = jnp.transpose(jnp.concatenate([x_nchw, skip_nchw], axis=1), (0, 2, 3, 1))  # NHWC
    N, H0, W0, _ = x.shape
    wt = params["convt_w"]
    Cout = wt.shape[1]
    y = jnp.einsum("nhwc,cokl->nhkwlo", x.astype(jnp.bfloat16), wt.astype(jnp.bfloat16),
                   preferred_element_type=jnp.float32)
    a = y.reshape(N, 2 * H0, 2 * W0, Cout) + params["convt_b"]
    for blk in ("res1", "res2"):
        for cv in ("c1", "c2"):
            p = params[blk][cv]
            conv = lax.conv_general_dilated(
                a.astype(jnp.bfloat16),
                jnp.transpose(p["w"], (2, 3, 1, 0)).astype(jnp.bfloat16),
                (1, 1), "SAME",
                dimension_numbers=("NHWC", "HWIO", "NHWC"),
                preferred_element_type=jnp.float32) + p["b"]
            mean = conv.mean(axis=(0, 1, 2))
            var = conv.var(axis=(0, 1, 2))
            h = (conv - mean) * lax.rsqrt(var + 1e-5) * p["gamma"] + p["beta"]
            a = _gelu_exact(h)
    return jnp.transpose(a, (0, 3, 1, 2))


if __name__ == "__main__":
    key = jax.random.PRNGKey(0)
    in_ch, out_ch = 16, 8          # UnetUp(in_channels=16, out_channels=8)
    N, H, W = 2, 8, 8              # x, skip: (N, in_ch//2, 8, 8) -> output (N, out_ch, 16, 16)
    kx, ks, kp = jax.random.split(key, 3)
    x = jax.random.normal(kx, (N, in_ch // 2, H, W), jnp.float32)      # NCHW
    skip = jax.random.normal(ks, (N, in_ch // 2, H, W), jnp.float32)   # NCHW
    params = init_params(kp, in_ch, out_ch)

    prepared = prepare_params(params, W0=W)          # hoisted weight prep (per weight update)
    fwd = jax.jit(unet_up_forward)
    out = jax.block_until_ready(fwd(prepared, x, skip))

    assert out.shape == (N, out_ch, 2 * H, 2 * W), out.shape
    ref = _ref_forward(params, x, skip)
    err = float(jnp.max(jnp.abs(out - ref)))
    if not bool(jnp.all(jnp.isfinite(out))) or err > 5e-3:
        raise SystemExit(f"mismatch vs reference: max abs err = {err}")
    print("KERNEL_OK")
</pallas_src>

<mosaic_0001>
module attributes {stable_mosaic.version = 11 : i64} {
  func.func @_unet_up_kernel(%arg0: memref<32x128xf32, #tpu.memory_space<vmem>>, %arg1: memref<2x128x128xbf16, #tpu.memory_space<vmem>>, %arg2: memref<1x128xf32, #tpu.memory_space<vmem>>, %arg3: memref<4x128x384xbf16, #tpu.memory_space<vmem>>, %arg4: memref<4x1x128xf32, #tpu.memory_space<vmem>>, %arg5: memref<4x1x128xf32, #tpu.memory_space<vmem>>, %arg6: memref<4x1x128xf32, #tpu.memory_space<vmem>>, %arg7: memref<32x128xf32, #tpu.memory_space<vmem>>) attributes {dimension_semantics = [], scalar_prefetch = 0 : i64, scratch_operands = 0 : i64, tpu.core_type = #tpu.core_type<tc>} {
    %0 = tpu.iota {dimensions = array<i32: 0>} : vector<32x128xi32>
    %c16_i32 = arith.constant 16 : i32
    %c0_i32 = arith.constant 0 : i32
    %1 = arith.cmpi eq, %c16_i32, %c0_i32 : i32
    %c1_i32 = arith.constant 1 : i32
    %2 = arith.select %1, %c1_i32, %c16_i32 : i32
    %3 = vector.broadcast %2 : i32 to vector<32x128xi32>
    %4 = arith.remsi %0, %3 : vector<32x128xi32>
    %c0_i32_0 = arith.constant 0 : i32
    %5 = vector.broadcast %c0_i32_0 : i32 to vector<32x128xi32>
    %6 = arith.cmpi ne, %4, %5 : vector<32x128xi32>
    %c0_i32_1 = arith.constant 0 : i32
    %7 = vector.broadcast %c0_i32_1 : i32 to vector<32x128xi32>
    %8 = arith.cmpi slt, %4, %7 : vector<32x128xi32>
    %c0_i32_2 = arith.constant 0 : i32
    %9 = arith.cmpi slt, %2, %c0_i32_2 : i32
    %10 = vector.broadcast %9 : i1 to vector<32x128xi1>
    %11 = vector.broadcast %10 : vector<32x128xi1> to vector<32x128xi1>
    %12 = arith.xori %8, %11 : vector<32x128xi1>
    %13 = arith.andi %12, %6 : vector<32x128xi1>
    %14 = vector.broadcast %2 : i32 to vector<32x128xi32>
    %15 = arith.addi %4, %14 : vector<32x128xi32>
    %16 = arith.select %13, %15, %4 : vector<32x128xi1>, vector<32x128xi32>
    %cst = arith.constant 0.000000e+00 : f32
    %17 = vector.broadcast %cst : f32 to vector<1x128xf32>
    %c0 = arith.constant 0 : index
    %c0_3 = arith.constant 0 : index
    %18 = vector.load %arg0[%c0, %c0_3] : memref<32x128xf32, #tpu.memory_space<vmem>>, vector<32x128xf32>
    %19 = arith.truncf %18 : vector<32x128xf32> to vector<32x128xbf16>
    %c0_4 = arith.constant 0 : index
    %c0_5 = arith.constant 0 : index
    %c0_6 = arith.constant 0 : index
    %20 = vector.load %arg1[%c0_4, %c0_5, %c0_6] : memref<2x128x128xbf16, #tpu.memory_space<vmem>>, vector<1x128x128xbf16>
    %21 = vector.shape_cast %20 : vector<1x128x128xbf16> to vector<128x128xbf16>
    %cst_7 = arith.constant dense<0.000000e+00> : vector<32x128xf32>
    %22 = tpu.matmul %19, %21, %cst_7 {dimension_numbers = #tpu.dot_dimension_numbers<[1], [0], [0], [1], [0, 0, 1, 1], [], []>} : vector<32x128xbf16>, vector<128x128xbf16>, vector<32x128xf32> -> vector<32x128xf32>
    %c1 = arith.constant 1 : index
    %c0_8 = arith.constant 0 : index
    %c0_9 = arith.constant 0 : index
    %23 = vector.load %arg1[%c1, %c0_8, %c0_9] : memref<2x128x128xbf16, #tpu.memory_space<vmem>>, vector<1x128x128xbf16>
    %24 = vector.shape_cast %23 : vector<1x128x128xbf16> to vector<128x128xbf16>
    %cst_10 = arith.constant dense<0.000000e+00> : vector<32x128xf32>
    %25 = tpu.matmul %19, %24, %cst_10 {dimension_numbers = #tpu.dot_dimension_numbers<[1], [0], [0], [1], [0, 0, 1, 1], [], []>} : vector<32x128xbf16>, vector<128x128xbf16>, vector<32x128xf32> -> vector<32x128xf32>
    %c2_i32 = arith.constant 2 : i32
    %c0_i32_11 = arith.constant 0 : i32
    %26 = arith.cmpi eq, %c2_i32, %c0_i32_11 : i32
    %c1_i32_12 = arith.constant 1 : i32
    %27 = arith.select %26, %c1_i32_12, %c2_i32 : i32
    %28 = vector.broadcast %27 : i32 to vector<32x128xi32>
    %29 = arith.remsi %0, %28 : vector<32x128xi32>
    %c0_i32_13 = arith.constant 0 : i32
    %30 = vector.broadcast %c0_i32_13 : i32 to vector<32x128xi32>
    %31 = arith.cmpi ne, %29, %30 : vector<32x128xi32>
    %c0_i32_14 = arith.constant 0 : i32
    %32 = vector.broadcast %c0_i32_14 : i32 to vector<32x128xi32>
    %33 = arith.cmpi slt, %29, %32 : vector<32x128xi32>
    %c0_i32_15 = arith.constant 0 : i32
    %34 = arith.cmpi slt, %27, %c0_i32_15 : i32
    %35 = vector.broadcast %34 : i1 to vector<32x128xi1>
    %36 = vector.broadcast %35 : vector<32x128xi1> to vector<32x128xi1>
    %37 = arith.xori %33, %36 : vector<32x128xi1>
    %38 = arith.andi %37, %31 : vector<32x128xi1>
    %39 = vector.broadcast %27 : i32 to vector<32x128xi32>
    %40 = arith.addi %29, %39 : vector<32x128xi32>
    %41 = arith.select %38, %40, %29 : vector<32x128xi1>, vector<32x128xi32>
    %c0_i32_16 = arith.constant 0 : i32
    %42 = vector.broadcast %c0_i32_16 : i32 to vector<32x128xi32>
    %43 = arith.cmpi eq, %41, %42 : vector<32x128xi32>
    %44 = arith.select %43, %22, %25 : vector<32x128xi1>, vector<32x128xf32>
    %c0_17 = arith.constant 0 : index
    %c0_18 = arith.constant 0 : index
    %45 = vector.load %arg2[%c0_17, %c0_18] : memref<1x128xf32, #tpu.memory_space<vmem>>, vector<1x128xf32>
    %46 = vector.broadcast %45 : vector<1x128xf32> to vector<32x128xf32>
    %47 = arith.addf %44, %46 : vector<32x128xf32>
    %48 = arith.truncf %47 : vector<32x128xf32> to vector<32x128xbf16>
    %c0_19 = arith.constant 0 : index
    %c0_20 = arith.constant 0 : index
    %c0_21 = arith.constant 0 : index
    %49 = vector.load %arg3[%c0_19, %c0_20, %c0_21] : memref<4x128x384xbf16, #tpu.memory_space<vmem>>, vector<1x128x384xbf16>
    %50 = vector.shape_cast %49 : vector<1x128x384xbf16> to vector<128x384xbf16>
    %cst_22 = arith.constant dense<0.000000e+00> : vector<32x384xf32>
    %51 = tpu.matmul %48, %50, %cst_22 {dimension_numbers = #tpu.dot_dimension_numbers<[1], [0], [0], [1], [0, 0, 1, 1], [], []>} : vector<32x128xbf16>, vector<128x384xbf16>, vector<32x384xf32> -> vector<32x384xf32>
    %52 = vector.extract_strided_slice %51 {offsets = [0, 0], sizes = [32, 128], strides = [1, 1]} : vector<32x384xf32> to vector<32x128xf32>
    %53 = vector.extract_strided_slice %51 {offsets = [0, 128], sizes = [32, 128], strides = [1, 1]} : vector<32x384xf32> to vector<32x128xf32>
    %54 = vector.extract_strided_slice %51 {offsets = [0, 256], sizes = [32, 128], strides = [1, 1]} : vector<32x384xf32> to vector<32x128xf32>
    %55 = vector.extract_strided_slice %52 {offsets = [0, 0], sizes = [31, 128], strides = [1, 1]} : vector<32x128xf32> to vector<31x128xf32>
    %56 = tpu.concatenate %17, %55 in 0 : vector<1x128xf32>, vector<31x128xf32> -> vector<32x128xf32>
    %c0_i32_23 = arith.constant 0 : i32
    %57 = vector.broadcast %c0_i32_23 : i32 to vector<32x128xi32>
    %58 = arith.cmpi eq, %16, %57 : vector<32x128xi32>
    %cst_24 = arith.constant 0.000000e+00 : f32
    %59 = vector.broadcast %cst_24 : f32 to vector<32x128xf32>
    %60 = arith.select %58, %59, %56 : vector<32x128xi1>, vector<32x128xf32>
    %61 = vector.extract_strided_slice %54 {offsets = [1, 0], sizes = [31, 128], strides = [1, 1]} : vector<32x128xf32> to vector<31x128xf32>
    %62 = tpu.concatenate %61, %17 in 0 : vector<31x128xf32>, vector<1x128xf32> -> vector<32x128xf32>
    %c15_i32 = arith.constant 15 : i32
    %63 = vector.broadcast %c15_i32 : i32 to vector<32x128xi32>
    %64 = arith.cmpi eq, %16, %63 : vector<32x128xi32>
    %cst_25 = arith.constant 0.000000e+00 : f32
    %65 = vector.broadcast %cst_25 : f32 to vector<32x128xf32>
    %66 = arith.select %64, %65, %62 : vector<32x128xi1>, vector<32x128xf32>
    %67 = arith.addf %60, %53 : vector<32x128xf32>
    %68 = arith.addf %67, %66 : vector<32x128xf32>
    %c0_26 = arith.constant 0 : index
    %c0_27 = arith.constant 0 : index
    %c0_28 = arith.constant 0 : index
    %69 = vector.load %arg4[%c0_26, %c0_27, %c0_28] : memref<4x1x128xf32, #tpu.memory_space<vmem>>, vector<1x1x128xf32>
    %70 = vector.shape_cast %69 : vector<1x1x128xf32> to vector<1x128xf32>
    %71 = vector.broadcast %70 : vector<1x128xf32> to vector<32x128xf32>
    %72 = arith.addf %68, %71 : vector<32x128xf32>
    %cst_29 = arith.constant dense<0.000000e+00> : vector<128xf32>
    %73 = vector.multi_reduction <add>, %72, %cst_29 [0] : vector<32x128xf32> to vector<128xf32>
    %74 = vector.shape_cast %73 : vector<128xf32> to vector<1x128xf32>
    %c8_i32 = arith.constant 8 : i32
    %75 = tpu.dynamic_rotate %74 by %c8_i32 dim 1 : vector<1x128xf32>, i32 -> vector<1x128xf32>
    %76 = arith.addf %74, %75 : vector<1x128xf32>
    %c16_i32_30 = arith.constant 16 : i32
    %77 = tpu.dynamic_rotate %76 by %c16_i32_30 dim 1 : vector<1x128xf32>, i32 -> vector<1x128xf32>
    %78 = arith.addf %76, %77 : vector<1x128xf32>
    %c32_i32 = arith.constant 32 : i32
    %79 = tpu.dynamic_rotate %78 by %c32_i32 dim 1 : vector<1x128xf32>, i32 -> vector<1x128xf32>
    %80 = arith.addf %78, %79 : vector<1x128xf32>
    %c64_i32 = arith.constant 64 : i32
    %81 = tpu.dynamic_rotate %80 by %c64_i32 dim 1 : vector<1x128xf32>, i32 -> vector<1x128xf32>
    %82 = arith.addf %80, %81 : vector<1x128xf32>
    %cst_31 = arith.constant 0.001953125 : f32
    %83 = vector.broadcast %cst_31 : f32 to vector<1x128xf32>
    %84 = arith.mulf %82, %83 : vector<1x128xf32>
    %85 = vector.broadcast %84 : vector<1x128xf32> to vector<32x128xf32>
    %86 = arith.subf %72, %85 : vector<32x128xf32>
    %87 = arith.mulf %86, %86 : vector<32x128xf32>
    %cst_32 = arith.constant dense<0.000000e+00> : vector<128xf32>
    %88 = vector.multi_reduction <add>, %87, %cst_32 [0] : vector<32x128xf32> to vector<128xf32>
    %89 = vector.shape_cast %88 : vector<128xf32> to vector<1x128xf32>
    %c8_i32_33 = arith.constant 8 : i32
    %90 = tpu.dynamic_rotate %89 by %c8_i32_33 dim 1 : vector<1x128xf32>, i32 -> vector<1x128xf32>
    %91 = arith.addf %89, %90 : vector<1x128xf32>
    %c16_i32_34 = arith.constant 16 : i32
    %92 = tpu.dynamic_rotate %91 by %c16_i32_34 dim 1 : vector<1x128xf32>, i32 -> vector<1x128xf32>
    %93 = arith.addf %91, %92 : vector<1x128xf32>
    %c32_i32_35 = arith.constant 32 : i32
    %94 = tpu.dynamic_rotate %93 by %c32_i32_35 dim 1 : vector<1x128xf32>, i32 -> vector<1x128xf32>
    %95 = arith.addf %93, %94 : vector<1x128xf32>
    %c64_i32_36 = arith.constant 64 : i32
    %96 = tpu.dynamic_rotate %95 by %c64_i32_36 dim 1 : vector<1x128xf32>, i32 -> vector<1x128xf32>
    %97 = arith.addf %95, %96 : vector<1x128xf32>
    %cst_37 = arith.constant 0.001953125 : f32
    %98 = vector.broadcast %cst_37 : f32 to vector<1x128xf32>
    %99 = arith.mulf %97, %98 : vector<1x128xf32>
    %c0_38 = arith.constant 0 : index
    %c0_39 = arith.constant 0 : index
    %c0_40 = arith.constant 0 : index
    %100 = vector.load %arg5[%c0_38, %c0_39, %c0_40] : memref<4x1x128xf32, #tpu.memory_space<vmem>>, vector<1x1x128xf32>
    %101 = vector.shape_cast %100 : vector<1x1x128xf32> to vector<1x128xf32>
    %cst_41 = arith.constant 9.99999974E-6 : f32
    %102 = vector.broadcast %cst_41 : f32 to vector<1x128xf32>
    %103 = arith.addf %99, %102 : vector<1x128xf32>
    %104 = math.rsqrt %103 : vector<1x128xf32>
    %105 = arith.mulf %101, %104 : vector<1x128xf32>
    %106 = vector.broadcast %105 : vector<1x128xf32> to vector<32x128xf32>
    %107 = arith.mulf %86, %106 : vector<32x128xf32>
    %c0_42 = arith.constant 0 : index
    %c0_43 = arith.constant 0 : index
    %c0_44 = arith.constant 0 : index
    %108 = vector.load %arg6[%c0_42, %c0_43, %c0_44] : memref<4x1x128xf32, #tpu.memory_space<vmem>>, vector<1x1x128xf32>
    %109 = vector.shape_cast %108 : vector<1x1x128xf32> to vector<1x128xf32>
    %110 = vector.broadcast %109 : vector<1x128xf32> to vector<32x128xf32>
    %111 = arith.addf %107, %110 : vector<32x128xf32>
    %cst_45 = arith.constant 5.000000e-01 : f32
    %112 = vector.broadcast %cst_45 : f32 to vector<32x128xf32>
    %113 = arith.mulf %112, %111 : vector<32x128xf32>
    %cst_46 = arith.constant 0.707106769 : f32
    %114 = vector.broadcast %cst_46 : f32 to vector<32x128xf32>
    %115 = arith.mulf %111, %114 : vector<32x128xf32>
    %116 = math.erf %115 : vector<32x128xf32>
    %cst_47 = arith.constant 1.000000e+00 : f32
    %117 = vector.broadcast %cst_47 : f32 to vector<32x128xf32>
    %118 = arith.addf %117, %116 : vector<32x128xf32>
    %119 = arith.mulf %113, %118 : vector<32x128xf32>
    %120 = arith.truncf %119 : vector<32x128xf32> to vector<32x128xbf16>
    %c1_48 = arith.constant 1 : index
    %c0_49 = arith.constant 0 : index
    %c0_50 = arith.constant 0 : index
    %121 = vector.load %arg3[%c1_48, %c0_49, %c0_50] : memref<4x128x384xbf16, #tpu.memory_space<vmem>>, vector<1x128x384xbf16>
    %122 = vector.shape_cast %121 : vector<1x128x384xbf16> to vector<128x384xbf16>
    %cst_51 = arith.constant dense<0.000000e+00> : vector<32x384xf32>
    %123 = tpu.matmul %120, %122, %cst_51 {dimension_numbers = #tpu.dot_dimension_numbers<[1], [0], [0], [1], [0, 0, 1, 1], [], []>} : vector<32x128xbf16>, vector<128x384xbf16>, vector<32x384xf32> -> vector<32x384xf32>
    %124 = vector.extract_strided_slice %123 {offsets = [0, 0], sizes = [32, 128], strides = [1, 1]} : vector<32x384xf32> to vector<32x128xf32>
    %125 = vector.extract_strided_slice %123 {offsets = [0, 128], sizes = [32, 128], strides = [1, 1]} : vector<32x384xf32> to vector<32x128xf32>
    %126 = vector.extract_strided_slice %123 {offsets = [0, 256], sizes = [32, 128], strides = [1, 1]} : vector<32x384xf32> to vector<32x128xf32>
    %127 = vector.extract_strided_slice %124 {offsets = [0, 0], sizes = [31, 128], strides = [1, 1]} : vector<32x128xf32> to vector<31x128xf32>
    %128 = tpu.concatenate %17, %127 in 0 : vector<1x128xf32>, vector<31x128xf32> -> vector<32x128xf32>
    %c0_i32_52 = arith.constant 0 : i32
    %129 = vector.broadcast %c0_i32_52 : i32 to vector<32x128xi32>
    %130 = arith.cmpi eq, %16, %129 : vector<32x128xi32>
    %cst_53 = arith.constant 0.000000e+00 : f32
    %131 = vector.broadcast %cst_53 : f32 to vector<32x128xf32>
    %132 = arith.select %130, %131, %128 : vector<32x128xi1>, vector<32x128xf32>
    %133 = vector.extract_strided_slice %126 {offsets = [1, 0], sizes = [31, 128], strides = [1, 1]} : vector<32x128xf32> to vector<31x128xf32>
    %134 = tpu.concatenate %133, %17 in 0 : vector<31x128xf32>, vector<1x128xf32> -> vector<32x128xf32>
    %c15_i32_54 = arith.constant 15 : i32
    %135 = vector.broadcast %c15_i32_54 : i32 to vector<32x128xi32>
    %136 = arith.cmpi eq, %16, %135 : vector<32x128xi32>
    %cst_55 = arith.constant 0.000000e+00 : f32
    %137 = vector.broadcast %cst_55 : f32 to vector<32x128xf32>
    %138 = arith.select %136, %137, %134 : vector<32x128xi1>, vector<32x128xf32>
    %139 = arith.addf %132, %125 : vector<32x128xf32>
    %140 = arith.addf %139, %138 : vector<32x128xf32>
    %c1_56 = arith.constant 1 : index
    %c0_57 = arith.constant 0 : index
    %c0_58 = arith.constant 0 : index
    %141 = vector.load %arg4[%c1_56, %c0_57, %c0_58] : memref<4x1x128xf32, #tpu.memory_space<vmem>>, vector<1x1x128xf32>
    %142 = vector.shape_cast %141 : vector<1x1x128xf32> to vector<1x128xf32>
    %143 = vector.broadcast %142 : vector<1x128xf32> to vector<32x128xf32>
    %144 = arith.addf %140, %143 : vector<32x128xf32>
    %cst_59 = arith.constant dense<0.000000e+00> : vector<128xf32>
    %145 = vector.multi_reduction <add>, %144, %cst_59 [0] : vector<32x128xf32> to vector<128xf32>
    %146 = vector.shape_cast %145 : vector<128xf32> to vector<1x128xf32>
    %c8_i32_60 = arith.constant 8 : i32
    %147 = tpu.dynamic_rotate %146 by %c8_i32_60 dim 1 : vector<1x128xf32>, i32 -> vector<1x128xf32>
    %148 = arith.addf %146, %147 : vector<1x128xf32>
    %c16_i32_61 = arith.constant 16 : i32
    %149 = tpu.dynamic_rotate %148 by %c16_i32_61 dim 1 : vector<1x128xf32>, i32 -> vector<1x128xf32>
    %150 = arith.addf %148, %149 : vector<1x128xf32>
    %c32_i32_62 = arith.constant 32 : i32
    %151 = tpu.dynamic_rotate %150 by %c32_i32_62 dim 1 : vector<1x128xf32>, i32 -> vector<1x128xf32>
    %152 = arith.addf %150, %151 : vector<1x128xf32>
    %c64_i32_63 = arith.constant 64 : i32
    %153 = tpu.dynamic_rotate %152 by %c64_i32_63 dim 1 : vector<1x128xf32>, i32 -> vector<1x128xf32>
    %154 = arith.addf %152, %153 : vector<1x128xf32>
    %cst_64 = arith.constant 0.001953125 : f32
    %155 = vector.broadcast %cst_64 : f32 to vector<1x128xf32>
    %156 = arith.mulf %154, %155 : vector<1x128xf32>
    %157 = vector.broadcast %156 : vector<1x128xf32> to vector<32x128xf32>
    %158 = arith.subf %144, %157 : vector<32x128xf32>
    %159 = arith.mulf %158, %158 : vector<32x128xf32>
    %cst_65 = arith.constant dense<0.000000e+00> : vector<128xf32>
    %160 = vector.multi_reduction <add>, %159, %cst_65 [0] : vector<32x128xf32> to vector<128xf32>
    %161 = vector.shape_cast %160 : vector<128xf32> to vector<1x128xf32>
    %c8_i32_66 = arith.constant 8 : i32
    %162 = tpu.dynamic_rotate %161 by %c8_i32_66 dim 1 : vector<1x128xf32>, i32 -> vector<1x128xf32>
    %163 = arith.addf %161, %162 : vector<1x128xf32>
    %c16_i32_67 = arith.constant 16 : i32
    %164 = tpu.dynamic_rotate %163 by %c16_i32_67 dim 1 : vector<1x128xf32>, i32 -> vector<1x128xf32>
    %165 = arith.addf %163, %164 : vector<1x128xf32>
    %c32_i32_68 = arith.constant 32 : i32
    %166 = tpu.dynamic_rotate %165 by %c32_i32_68 dim 1 : vector<1x128xf32>, i32 -> vector<1x128xf32>
    %167 = arith.addf %165, %166 : vector<1x128xf32>
    %c64_i32_69 = arith.constant 64 : i32
    %168 = tpu.dynamic_rotate %167 by %c64_i32_69 dim 1 : vector<1x128xf32>, i32 -> vector<1x128xf32>
    %169 = arith.addf %167, %168 : vector<1x128xf32>
    %cst_70 = arith.constant 0.001953125 : f32
    %170 = vector.broadcast %cst_70 : f32 to vector<1x128xf32>
    %171 = arith.mulf %169, %170 : vector<1x128xf32>
    %c1_71 = arith.constant 1 : index
    %c0_72 = arith.constant 0 : index
    %c0_73 = arith.constant 0 : index
    %172 = vector.load %arg5[%c1_71, %c0_72, %c0_73] : memref<4x1x128xf32, #tpu.memory_space<vmem>>, vector<1x1x128xf32>
    %173 = vector.shape_cast %172 : vector<1x1x128xf32> to vector<1x128xf32>
    %cst_74 = arith.constant 9.99999974E-6 : f32
    %174 = vector.broadcast %cst_74 : f32 to vector<1x128xf32>
    %175 = arith.addf %171, %174 : vector<1x128xf32>
    %176 = math.rsqrt %175 : vector<1x128xf32>
    %177 = arith.mulf %173, %176 : vector<1x128xf32>
    %178 = vector.broadcast %177 : vector<1x128xf32> to vector<32x128xf32>
    %179 = arith.mulf %158, %178 : vector<32x128xf32>
    %c1_75 = arith.constant 1 : index
    %c0_76 = arith.constant 0 : index
    %c0_77 = arith.constant 0 : index
    %180 = vector.load %arg6[%c1_75, %c0_76, %c0_77] : memref<4x1x128xf32, #tpu.memory_space<vmem>>, vector<1x1x128xf32>
    %181 = vector.shape_cast %180 : vector<1x1x128xf32> to vector<1x128xf32>
    %182 = vector.broadcast %181 : vector<1x128xf32> to vector<32x128xf32>
    %183 = arith.addf %179, %182 : vector<32x128xf32>
    %cst_78 = arith.constant 5.000000e-01 : f32
    %184 = vector.broadcast %cst_78 : f32 to vector<32x128xf32>
    %185 = arith.mulf %184, %183 : vector<32x128xf32>
    %cst_79 = arith.constant 0.707106769 : f32
    %186 = vector.broadcast %cst_79 : f32 to vector<32x128xf32>
    %187 = arith.mulf %183, %186 : vector<32x128xf32>
    %188 = math.erf %187 : vector<32x128xf32>
    %cst_80 = arith.constant 1.000000e+00 : f32
    %189 = vector.broadcast %cst_80 : f32 to vector<32x128xf32>
    %190 = arith.addf %189, %188 : vector<32x128xf32>
    %191 = arith.mulf %185, %190 : vector<32x128xf32>
    %192 = arith.truncf %191 : vector<32x128xf32> to vector<32x128xbf16>
    %c2 = arith.constant 2 : index
    %c0_81 = arith.constant 0 : index
    %c0_82 = arith.constant 0 : index
    %193 = vector.load %arg3[%c2, %c0_81, %c0_82] : memref<4x128x384xbf16, #tpu.memory_space<vmem>>, vector<1x128x384xbf16>
    %194 = vector.shape_cast %193 : vector<1x128x384xbf16> to vector<128x384xbf16>
    %cst_83 = arith.constant dense<0.000000e+00> : vector<32x384xf32>
    %195 = tpu.matmul %192, %194, %cst_83 {dimension_numbers = #tpu.dot_dimension_numbers<[1], [0], [0], [1], [0, 0, 1, 1], [], []>} : vector<32x128xbf16>, vector<128x384xbf16>, vector<32x384xf32> -> vector<32x384xf32>
    %196 = vector.extract_strided_slice %195 {offsets = [0, 0], sizes = [32, 128], strides = [1, 1]} : vector<32x384xf32> to vector<32x128xf32>
    %197 = vector.extract_strided_slice %195 {offsets = [0, 128], sizes = [32, 128], strides = [1, 1]} : vector<32x384xf32> to vector<32x128xf32>
    %198 = vector.extract_strided_slice %195 {offsets = [0, 256], sizes = [32, 128], strides = [1, 1]} : vector<32x384xf32> to vector<32x128xf32>
    %199 = vector.extract_strided_slice %196 {offsets = [0, 0], sizes = [31, 128], strides = [1, 1]} : vector<32x128xf32> to vector<31x128xf32>
    %200 = tpu.concatenate %17, %199 in 0 : vector<1x128xf32>, vector<31x128xf32> -> vector<32x128xf32>
    %c0_i32_84 = arith.constant 0 : i32
    %201 = vector.broadcast %c0_i32_84 : i32 to vector<32x128xi32>
    %202 = arith.cmpi eq, %16, %201 : vector<32x128xi32>
    %cst_85 = arith.constant 0.000000e+00 : f32
    %203 = vector.broadcast %cst_85 : f32 to vector<32x128xf32>
    %204 = arith.select %202, %203, %200 : vector<32x128xi1>, vector<32x128xf32>
    %205 = vector.extract_strided_slice %198 {offsets = [1, 0], sizes = [31, 128], strides = [1, 1]} : vector<32x128xf32> to vector<31x128xf32>
    %206 = tpu.concatenate %205, %17 in 0 : vector<31x128xf32>, vector<1x128xf32> -> vector<32x128xf32>
    %c15_i32_86 = arith.constant 15 : i32
    %207 = vector.broadcast %c15_i32_86 : i32 to vector<32x128xi32>
    %208 = arith.cmpi eq, %16, %207 : vector<32x128xi32>
    %cst_87 = arith.constant 0.000000e+00 : f32
    %209 = vector.broadcast %cst_87 : f32 to vector<32x128xf32>
    %210 = arith.select %208, %209, %206 : vector<32x128xi1>, vector<32x128xf32>
    %211 = arith.addf %204, %197 : vector<32x128xf32>
    %212 = arith.addf %211, %210 : vector<32x128xf32>
    %c2_88 = arith.constant 2 : index
    %c0_89 = arith.constant 0 : index
    %c0_90 = arith.constant 0 : index
    %213 = vector.load %arg4[%c2_88, %c0_89, %c0_90] : memref<4x1x128xf32, #tpu.memory_space<vmem>>, vector<1x1x128xf32>
    %214 = vector.shape_cast %213 : vector<1x1x128xf32> to vector<1x128xf32>
    %215 = vector.broadcast %214 : vector<1x128xf32> to vector<32x128xf32>
    %216 = arith.addf %212, %215 : vector<32x128xf32>
    %cst_91 = arith.constant dense<0.000000e+00> : vector<128xf32>
    %217 = vector.multi_reduction <add>, %216, %cst_91 [0] : vector<32x128xf32> to vector<128xf32>
    %218 = vector.shape_cast %217 : vector<128xf32> to vector<1x128xf32>
    %c8_i32_92 = arith.constant 8 : i32
    %219 = tpu.dynamic_rotate %218 by %c8_i32_92 dim 1 : vector<1x128xf32>, i32 -> vector<1x128xf32>
    %220 = arith.addf %218, %219 : vector<1x128xf32>
    %c16_i32_93 = arith.constant 16 : i32
    %221 = tpu.dynamic_rotate %220 by %c16_i32_93 dim 1 : vector<1x128xf32>, i32 -> vector<1x128xf32>
    %222 = arith.addf %220, %221 : vector<1x128xf32>
    %c32_i32_94 = arith.constant 32 : i32
    %223 = tpu.dynamic_rotate %222 by %c32_i32_94 dim 1 : vector<1x128xf32>, i32 -> vector<1x128xf32>
    %224 = arith.addf %222, %223 : vector<1x128xf32>
    %c64_i32_95 = arith.constant 64 : i32
    %225 = tpu.dynamic_rotate %224 by %c64_i32_95 dim 1 : vector<1x128xf32>, i32 -> vector<1x128xf32>
    %226 = arith.addf %224, %225 : vector<1x128xf32>
    %cst_96 = arith.constant 0.001953125 : f32
    %227 = vector.broadcast %cst_96 : f32 to vector<1x128xf32>
    %228 = arith.mulf %226, %227 : vector<1x128xf32>
    %229 = vector.broadcast %228 : vector<1x128xf32> to vector<32x128xf32>
    %230 = arith.subf %216, %229 : vector<32x128xf32>
    %231 = arith.mulf %230, %230 : vector<32x128xf32>
    %cst_97 = arith.constant dense<0.000000e+00> : vector<128xf32>
    %232 = vector.multi_reduction <add>, %231, %cst_97 [0] : vector<32x128xf32> to vector<128xf32>
    %233 = vector.shape_cast %232 : vector<128xf32> to vector<1x128xf32>
    %c8_i32_98 = arith.constant 8 : i32
    %234 = tpu.dynamic_rotate %233 by %c8_i32_98 dim 1 : vector<1x128xf32>, i32 -> vector<1x128xf32>
    %235 = arith.addf %233, %234 : vector<1x128xf32>
    %c16_i32_99 = arith.constant 16 : i32
    %236 = tpu.dynamic_rotate %235 by %c16_i32_99 dim 1 : vector<1x128xf32>, i32 -> vector<1x128xf32>
    %237 = arith.addf %235, %236 : vector<1x128xf32>
    %c32_i32_100 = arith.constant 32 : i32
    %238 = tpu.dynamic_rotate %237 by %c32_i32_100 dim 1 : vector<1x128xf32>, i32 -> vector<1x128xf32>
    %239 = arith.addf %237, %238 : vector<1x128xf32>
    %c64_i32_101 = arith.constant 64 : i32
    %240 = tpu.dynamic_rotate %239 by %c64_i32_101 dim 1 : vector<1x128xf32>, i32 -> vector<1x128xf32>
    %241 = arith.addf %239, %240 : vector<1x128xf32>
    %cst_102 = arith.constant 0.001953125 : f32
    %242 = vector.broadcast %cst_102 : f32 to vector<1x128xf32>
    %243 = arith.mulf %241, %242 : vector<1x128xf32>
    %c2_103 = arith.constant 2 : index
    %c0_104 = arith.constant 0 : index
    %c0_105 = arith.constant 0 : index
    %244 = vector.load %arg5[%c2_103, %c0_104, %c0_105] : memref<4x1x128xf32, #tpu.memory_space<vmem>>, vector<1x1x128xf32>
    %245 = vector.shape_cast %244 : vector<1x1x128xf32> to vector<1x128xf32>
    %cst_106 = arith.constant 9.99999974E-6 : f32
    %246 = vector.broadcast %cst_106 : f32 to vector<1x128xf32>
    %247 = arith.addf %243, %246 : vector<1x128xf32>
    %248 = math.rsqrt %247 : vector<1x128xf32>
    %249 = arith.mulf %245, %248 : vector<1x128xf32>
    %250 = vector.broadcast %249 : vector<1x128xf32> to vector<32x128xf32>
    %251 = arith.mulf %230, %250 : vector<32x128xf32>
    %c2_107 = arith.constant 2 : index
    %c0_108 = arith.constant 0 : index
    %c0_109 = arith.constant 0 : index
    %252 = vector.load %arg6[%c2_107, %c0_108, %c0_109] : memref<4x1x128xf32, #tpu.memory_space<vmem>>, vector<1x1x128xf32>
    %253 = vector.shape_cast %252 : vector<1x1x128xf32> to vector<1x128xf32>
    %254 = vector.broadcast %253 : vector<1x128xf32> to vector<32x128xf32>
    %255 = arith.addf %251, %254 : vector<32x128xf32>
    %cst_110 = arith.constant 5.000000e-01 : f32
    %256 = vector.broadcast %cst_110 : f32 to vector<32x128xf32>
    %257 = arith.mulf %256, %255 : vector<32x128xf32>
    %cst_111 = arith.constant 0.707106769 : f32
    %258 = vector.broadcast %cst_111 : f32 to vector<32x128xf32>
    %259 = arith.mulf %255, %258 : vector<32x128xf32>
    %260 = math.erf %259 : vector<32x128xf32>
    %cst_112 = arith.constant 1.000000e+00 : f32
    %261 = vector.broadcast %cst_112 : f32 to vector<32x128xf32>
    %262 = arith.addf %261, %260 : vector<32x128xf32>
    %263 = arith.mulf %257, %262 : vector<32x128xf32>
    %264 = arith.truncf %263 : vector<32x128xf32> to vector<32x128xbf16>
    %c3 = arith.constant 3 : index
    %c0_113 = arith.constant 0 : index
    %c0_114 = arith.constant 0 : index
    %265 = vector.load %arg3[%c3, %c0_113, %c0_114] : memref<4x128x384xbf16, #tpu.memory_space<vmem>>, vector<1x128x384xbf16>
    %266 = vector.shape_cast %265 : vector<1x128x384xbf16> to vector<128x384xbf16>
    %cst_115 = arith.constant dense<0.000000e+00> : vector<32x384xf32>
    %267 = tpu.matmul %264, %266, %cst_115 {dimension_numbers = #tpu.dot_dimension_numbers<[1], [0], [0], [1], [0, 0, 1, 1], [], []>} : vector<32x128xbf16>, vector<128x384xbf16>, vector<32x384xf32> -> vector<32x384xf32>
    %268 = vector.extract_strided_slice %267 {offsets = [0, 0], sizes = [32, 128], strides = [1, 1]} : vector<32x384xf32> to vector<32x128xf32>
    %269 = vector.extract_strided_slice %267 {offsets = [0, 128], sizes = [32, 128], strides = [1, 1]} : vector<32x384xf32> to vector<32x128xf32>
    %270 = vector.extract_strided_slice %267 {offsets = [0, 256], sizes = [32, 128], strides = [1, 1]} : vector<32x384xf32> to vector<32x128xf32>
    %271 = vector.extract_strided_slice %268 {offsets = [0, 0], sizes = [31, 128], strides = [1, 1]} : vector<32x128xf32> to vector<31x128xf32>
    %272 = tpu.concatenate %17, %271 in 0 : vector<1x128xf32>, vector<31x128xf32> -> vector<32x128xf32>
    %c0_i32_116 = arith.constant 0 : i32
    %273 = vector.broadcast %c0_i32_116 : i32 to vector<32x128xi32>
    %274 = arith.cmpi eq, %16, %273 : vector<32x128xi32>
    %cst_117 = arith.constant 0.000000e+00 : f32
    %275 = vector.broadcast %cst_117 : f32 to vector<32x128xf32>
    %276 = arith.select %274, %275, %272 : vector<32x128xi1>, vector<32x128xf32>
    %277 = vector.extract_strided_slice %270 {offsets = [1, 0], sizes = [31, 128], strides = [1, 1]} : vector<32x128xf32> to vector<31x128xf32>
    %278 = tpu.concatenate %277, %17 in 0 : vector<31x128xf32>, vector<1x128xf32> -> vector<32x128xf32>
    %c15_i32_118 = arith.constant 15 : i32
    %279 = vector.broadcast %c15_i32_118 : i32 to vector<32x128xi32>
    %280 = arith.cmpi eq, %16, %279 : vector<32x128xi32>
    %cst_119 = arith.constant 0.000000e+00 : f32
    %281 = vector.broadcast %cst_119 : f32 to vector<32x128xf32>
    %282 = arith.select %280, %281, %278 : vector<32x128xi1>, vector<32x128xf32>
    %283 = arith.addf %276, %269 : vector<32x128xf32>
    %284 = arith.addf %283, %282 : vector<32x128xf32>
    %c3_120 = arith.constant 3 : index
    %c0_121 = arith.constant 0 : index
    %c0_122 = arith.constant 0 : index
    %285 = vector.load %arg4[%c3_120, %c0_121, %c0_122] : memref<4x1x128xf32, #tpu.memory_space<vmem>>, vector<1x1x128xf32>
    %286 = vector.shape_cast %285 : vector<1x1x128xf32> to vector<1x128xf32>
    %287 = vector.broadcast %286 : vector<1x128xf32> to vector<32x128xf32>
    %288 = arith.addf %284, %287 : vector<32x128xf32>
    %cst_123 = arith.constant dense<0.000000e+00> : vector<128xf32>
    %289 = vector.multi_reduction <add>, %288, %cst_123 [0] : vector<32x128xf32> to vector<128xf32>
    %290 = vector.shape_cast %289 : vector<128xf32> to vector<1x128xf32>
    %c8_i32_124 = arith.constant 8 : i32
    %291 = tpu.dynamic_rotate %290 by %c8_i32_124 dim 1 : vector<1x128xf32>, i32 -> vector<1x128xf32>
    %292 = arith.addf %290, %291 : vector<1x128xf32>
    %c16_i32_125 = arith.constant 16 : i32
    %293 = tpu.dynamic_rotate %292 by %c16_i32_125 dim 1 : vector<1x128xf32>, i32 -> vector<1x128xf32>
    %294 = arith.addf %292, %293 : vector<1x128xf32>
    %c32_i32_126 = arith.constant 32 : i32
    %295 = tpu.dynamic_rotate %294 by %c32_i32_126 dim 1 : vector<1x128xf32>, i32 -> vector<1x128xf32>
    %296 = arith.addf %294, %295 : vector<1x128xf32>
    %c64_i32_127 = arith.constant 64 : i32
    %297 = tpu.dynamic_rotate %296 by %c64_i32_127 dim 1 : vector<1x128xf32>, i32 -> vector<1x128xf32>
    %298 = arith.addf %296, %297 : vector<1x128xf32>
    %cst_128 = arith.constant 0.001953125 : f32
    %299 = vector.broadcast %cst_128 : f32 to vector<1x128xf32>
    %300 = arith.mulf %298, %299 : vector<1x128xf32>
    %301 = vector.broadcast %300 : vector<1x128xf32> to vector<32x128xf32>
    %302 = arith.subf %288, %301 : vector<32x128xf32>
    %303 = arith.mulf %302, %302 : vector<32x128xf32>
    %cst_129 = arith.constant dense<0.000000e+00> : vector<128xf32>
    %304 = vector.multi_reduction <add>, %303, %cst_129 [0] : vector<32x128xf32> to vector<128xf32>
    %305 = vector.shape_cast %304 : vector<128xf32> to vector<1x128xf32>
    %c8_i32_130 = arith.constant 8 : i32
    %306 = tpu.dynamic_rotate %305 by %c8_i32_130 dim 1 : vector<1x128xf32>, i32 -> vector<1x128xf32>
    %307 = arith.addf %305, %306 : vector<1x128xf32>
    %c16_i32_131 = arith.constant 16 : i32
    %308 = tpu.dynamic_rotate %307 by %c16_i32_131 dim 1 : vector<1x128xf32>, i32 -> vector<1x128xf32>
    %309 = arith.addf %307, %308 : vector<1x128xf32>
    %c32_i32_132 = arith.constant 32 : i32
    %310 = tpu.dynamic_rotate %309 by %c32_i32_132 dim 1 : vector<1x128xf32>, i32 -> vector<1x128xf32>
    %311 = arith.addf %309, %310 : vector<1x128xf32>
    %c64_i32_133 = arith.constant 64 : i32
    %312 = tpu.dynamic_rotate %311 by %c64_i32_133 dim 1 : vector<1x128xf32>, i32 -> vector<1x128xf32>
    %313 = arith.addf %311, %312 : vector<1x128xf32>
    %cst_134 = arith.constant 0.001953125 : f32
    %314 = vector.broadcast %cst_134 : f32 to vector<1x128xf32>
    %315 = arith.mulf %313, %314 : vector<1x128xf32>
    %c3_135 = arith.constant 3 : index
    %c0_136 = arith.constant 0 : index
    %c0_137 = arith.constant 0 : index
    %316 = vector.load %arg5[%c3_135, %c0_136, %c0_137] : memref<4x1x128xf32, #tpu.memory_space<vmem>>, vector<1x1x128xf32>
    %317 = vector.shape_cast %316 : vector<1x1x128xf32> to vector<1x128xf32>
    %cst_138 = arith.constant 9.99999974E-6 : f32
    %318 = vector.broadcast %cst_138 : f32 to vector<1x128xf32>
    %319 = arith.addf %315, %318 : vector<1x128xf32>
    %320 = math.rsqrt %319 : vector<1x128xf32>
    %321 = arith.mulf %317, %320 : vector<1x128xf32>
    %322 = vector.broadcast %321 : vector<1x128xf32> to vector<32x128xf32>
    %323 = arith.mulf %302, %322 : vector<32x128xf32>
    %c3_139 = arith.constant 3 : index
    %c0_140 = arith.constant 0 : index
    %c0_141 = arith.constant 0 : index
    %324 = vector.load %arg6[%c3_139, %c0_140, %c0_141] : memref<4x1x128xf32, #tpu.memory_space<vmem>>, vector<1x1x128xf32>
    %325 = vector.shape_cast %324 : vector<1x1x128xf32> to vector<1x128xf32>
    %326 = vector.broadcast %325 : vector<1x128xf32> to vector<32x128xf32>
    %327 = arith.addf %323, %326 : vector<32x128xf32>
    %cst_142 = arith.constant 5.000000e-01 : f32
    %328 = vector.broadcast %cst_142 : f32 to vector<32x128xf32>
    %329 = arith.mulf %328, %327 : vector<32x128xf32>
    %cst_143 = arith.constant 0.707106769 : f32
    %330 = vector.broadcast %cst_143 : f32 to vector<32x128xf32>
    %331 = arith.mulf %327, %330 : vector<32x128xf32>
    %332 = math.erf %331 : vector<32x128xf32>
    %cst_144 = arith.constant 1.000000e+00 : f32
    %333 = vector.broadcast %cst_144 : f32 to vector<32x128xf32>
    %334 = arith.addf %333, %332 : vector<32x128xf32>
    %335 = arith.mulf %329, %334 : vector<32x128xf32>
    %c0_145 = arith.constant 0 : index
    %c0_146 = arith.constant 0 : index
    %336 = vector.load %arg7[%c0_145, %c0_146] : memref<32x128xf32, #tpu.memory_space<vmem>>, vector<32x128xf32>
    tpu.vector_store %arg7[%c0_145, %c0_146], %335 {strides = array<i32>} : memref<32x128xf32, #tpu.memory_space<vmem>>, vector<32x128xf32>,
    return
  }
}

</mosaic_0001>

<llo_original>
// kernel: unet_up_forward.1
$region0: #{unet_up_forward.1}
  #allocation0 [shape = 'u32[]', space=smem, size = 0x4, offset = 0x4, fixed_abs, tag = 'smem constant byte address 0x4 - core index']
  #allocation1 [shape = 'u32[144,128]{1,0:T(1,128)}', space=vmem, size = 0x12000, scoped, tag = 'internal scratch']
  %s0 = inlined_call_operand.vmem [shape: f32[32,128], index: 0, kind: input, shape index: {}]
  %s1 = inlined_call_operand.vmem [shape: bf16[2,128,128], index: 1, kind: input, shape index: {}]
  %s2 = inlined_call_operand.vmem [shape: f32[1,128], index: 2, kind: input, shape index: {}]
  %s3 = inlined_call_operand.vmem [shape: bf16[4,128,384], index: 3, kind: input, shape index: {}]
  %s4 = inlined_call_operand.vmem [shape: f32[4,1,128], index: 4, kind: input, shape index: {}]
  %s5 = inlined_call_operand.vmem [shape: f32[4,1,128], index: 5, kind: input, shape index: {}]
  %s6 = inlined_call_operand.vmem [shape: f32[4,1,128], index: 6, kind: input, shape index: {}]
  %s7 = inlined_call_operand.vmem [shape: f32[32,128], index: 7, kind: output, shape index: {}]
  %s8 = sld [smem:[#allocation0]]
  $region38: #{unet_up_forward.1} parent=0
    _
  %s10 = ssub.s32 1, %s8
  %s11 = scalar_select 0, %s10, %s8
  // Predicated region
  $region2: #{unet_up_forward.1} parent=0 // pred_check
    _
  $region3: #{unet_up_forward.1} parent=0 // pred_check_branch
    %13 = sbr.rel (0) target = $region5
  $region4: #{unet_up_forward.1} parent=0 // pred_region
    _
  $region5: #{unet_up_forward.1} parent=0 // pred_fallthru
    _
  // Predicated region
  $region6: #{unet_up_forward.1} parent=0 // pred_check
    _
  $region7: #{unet_up_forward.1} parent=0 // pred_check_branch
    %15 = sbr.rel (0) target = $region9
  $region8: #{unet_up_forward.1} parent=0 // pred_region
    _
  $region9: #{unet_up_forward.1} parent=0 // pred_fallthru
    _
  // Predicated region
  $region10: #{unet_up_forward.1} parent=0 // pred_check
    _
  $region11: #{unet_up_forward.1} parent=0 // pred_check_branch
    %17 = sbr.rel (0) target = $region13
  $region12: #{unet_up_forward.1} parent=0 // pred_region
    _
  $region13: #{unet_up_forward.1} parent=0 // pred_fallthru
    _
  // Predicated region
  $region14: #{unet_up_forward.1} parent=0 // pred_check
    _
  $region15: #{unet_up_forward.1} parent=0 // pred_check_branch
    %19 = sbr.rel (0) target = $region17
  $region16: #{unet_up_forward.1} parent=0 // pred_region
    _
  $region17: #{unet_up_forward.1} parent=0 // pred_fallthru
    _
  // Predicated region
  $region18: #{unet_up_forward.1} parent=0 // pred_check
    _
  $region19: #{unet_up_forward.1} parent=0 // pred_check_branch
    %21 = sbr.rel (0) target = $region21
  $region20: #{unet_up_forward.1} parent=0 // pred_region
    _
  $region21: #{unet_up_forward.1} parent=0 // pred_fallthru
    _
  // Predicated region
  $region22: #{unet_up_forward.1} parent=0 // pred_check
    _
  $region23: #{unet_up_forward.1} parent=0 // pred_check_branch
    %23 = sbr.rel (0) target = $region25
  $region24: #{unet_up_forward.1} parent=0 // pred_region
    _
  $region25: #{unet_up_forward.1} parent=0 // pred_fallthru
    _
  // Predicated region
  $region26: #{unet_up_forward.1} parent=0 // pred_check
    _
  $region27: #{unet_up_forward.1} parent=0 // pred_check_branch
    %25 = sbr.rel (0) target = $region29
  $region28: #{unet_up_forward.1} parent=0 // pred_region
    _
  $region29: #{unet_up_forward.1} parent=0 // pred_fallthru
    _
  %v27 = vlaneseq
  %v28 = vshrl.u32 %v27, 7
  %v29 = vadd.s32 %v28, 8
  %v30 = vadd.s32 %v28, 16
  %v31 = vadd.s32 %v28, 24
  %vm32 = vcmp.lt.s32.totalorder %v28, 0
  %v33 = vsub.s32 0, %v28
  %v34 = vsel %vm32, %v33, %v28
  %v35 = vshrl.u32 %v34, 4
  %v36 = vand.u32 %v34, 15
  %v37 = vsub.s32 0, %v36
  %v38 = vsel %vm32, %v37, %v36
  %vm39 = vcmp.lt.s32.totalorder %v29, 0
  %v40 = vsub.s32 0, %v29
  %v41 = vsel %vm39, %v40, %v29
  %v42 = vshrl.u32 %v41, 4
  %v43 = vand.u32 %v41, 15
  %v44 = vsub.s32 0, %v43
  %v45 = vsel %vm39, %v44, %v43
  %vm46 = vcmp.lt.s32.totalorder %v30, 0
  %v47 = vsub.s32 0, %v30
  %v48 = vsel %vm46, %v47, %v30
  %v49 = vshrl.u32 %v48, 4
  %v50 = vand.u32 %v48, 15
  %v51 = vsub.s32 0, %v50
  %v52 = vsel %vm46, %v51, %v50
  %vm53 = vcmp.lt.s32.totalorder %v31, 0
  %v54 = vsub.s32 0, %v31
  %v55 = vsel %vm53, %v54, %v31
  %v56 = vshrl.u32 %v55, 4
  %v57 = vand.u32 %v55, 15
  %v58 = vsub.s32 0, %v57
  %v59 = vsel %vm53, %v58, %v57
  %vm60 = vcmp.ne.s32.totalorder %v38, 0
  %vm61 = vcmp.ne.s32.totalorder %v45, 0
  %vm62 = vcmp.ne.s32.totalorder %v52, 0
  %vm63 = vcmp.ne.s32.totalorder %v59, 0
  %vm64 = vcmp.lt.s32.totalorder %v38, 0
  %vm65 = vcmp.lt.s32.totalorder %v45, 0
  %vm66 = vcmp.lt.s32.totalorder %v52, 0
  %vm67 = vcmp.lt.s32.totalorder %v59, 0
  %vm68 = vmand %vm64, %vm60
  %vm69 = vmand %vm65, %vm61
  %vm70 = vmand %vm66, %vm62
  %vm71 = vmand %vm67, %vm63
  %v72 = vadd.s32 %v38, 16
  %v73 = vadd.s32 %v45, 16
  %v74 = vadd.s32 %v52, 16
  %v75 = vadd.s32 %v59, 16
  %v76 = vsel %vm68, %v72, %v38
  %v77 = vsel %vm69, %v73, %v45
  %v78 = vsel %vm70, %v74, %v52
  %v79 = vsel %vm71, %v75, %v59
  %v80 = vld [vmem:[%s0] sm:$0xff]
  %v81 = vld [vmem:[%s0 + $0x8] sm:$0xff]
  %v82 = vld [vmem:[%s0 + $0x10] sm:$0xff]
  %v83 = vld [vmem:[%s0 + $0x18] sm:$0xff]
  %v84 = vpack.c.bf16 %v81, %v80
  %v85 = vpack.c.bf16 %v83, %v82
  %v86 = vld [vmem:[%s1] sm:$0xf]
  %v87 = vld [vmem:[%s1 + $0x4] sm:$0xf]
  %v88 = vld [vmem:[%s1 + $0x8] sm:$0xf]
  %v89 = vld [vmem:[%s1 + $0xc] sm:$0xf]
  %v90 = vld [vmem:[%s1 + $0x10] sm:$0xf]
  %v91 = vld [vmem:[%s1 + $0x14] sm:$0xf]
  %v92 = vld [vmem:[%s1 + $0x18] sm:$0xf]
  %v93 = vld [vmem:[%s1 + $0x1c] sm:$0xf]
  %v94 = vld [vmem:[%s1 + $0x20] sm:$0xf]
  %v95 = vld [vmem:[%s1 + $0x24] sm:$0xf]
  %v96 = vld [vmem:[%s1 + $0x28] sm:$0xf]
  %v97 = vld [vmem:[%s1 + $0x2c] sm:$0xf]
  %v98 = vld [vmem:[%s1 + $0x30] sm:$0xf]
  %v99 = vld [vmem:[%s1 + $0x34] sm:$0xf]
  %v100 = vld [vmem:[%s1 + $0x38] sm:$0xf]
  %v101 = vld [vmem:[%s1 + $0x3c] sm:$0xf]
  %v118 = vunpack.c.l.b16 %v86
  %v119 = vunpack.c.l.b16 %v87
  %v120 = vunpack.c.l.b16 %v88
  %v121 = vunpack.c.l.b16 %v89
  %v122 = vunpack.c.l.b16 %v90
  %v123 = vunpack.c.l.b16 %v91
  %v124 = vunpack.c.l.b16 %v92
  %v125 = vunpack.c.l.b16 %v93
  %v126 = vunpack.c.l.b16 %v94
  %v127 = vunpack.c.l.b16 %v95
  %v128 = vunpack.c.l.b16 %v96
  %v129 = vunpack.c.l.b16 %v97
  %v130 = vunpack.c.l.b16 %v98
  %v131 = vunpack.c.l.b16 %v99
  %v132 = vunpack.c.l.b16 %v100
  %v133 = vunpack.c.l.b16 %v101
  %v134 = vpack.c.b16 %v119, %v118
  %v135 = vpack.c.b16 %v121, %v120
  %v136 = vpack.c.b16 %v123, %v122
  %v137 = vpack.c.b16 %v125, %v124
  %v138 = vpack.c.b16 %v127, %v126
  %v139 = vpack.c.b16 %v129, %v128
  %v140 = vpack.c.b16 %v131, %v130
  %v141 = vpack.c.b16 %v133, %v132
  %150 = vmatprep.subr.bf16.mxu0 0
  %151 = vmatpush1.bf16.msra.mxu0 %v134
  %152 = vmatprep.subr.bf16.mxu0 0
  %153 = vmatpush1.bf16.msra.mxu0 %v135
  %154 = vmatprep.subr.bf16.mxu0 0
  %155 = vmatpush1.bf16.msra.mxu0 %v136
  %156 = vmatprep.subr.bf16.mxu0 0
  %157 = vmatpush1.bf16.msra.mxu0 %v137
  %158 = vmatprep.subr.bf16.mxu0 0
  %159 = vmatpush1.bf16.msra.mxu0 %v138
  %160 = vmatprep.subr.bf16.mxu0 0
  %161 = vmatpush1.bf16.msra.mxu0 %v139
  %162 = vmatprep.subr.bf16.mxu0 0
  %163 = vmatpush1.bf16.msra.mxu0 %v140
  %164 = vmatprep.subr.bf16.mxu0 0
  %165 = vmatpush1.bf16.msra.mxu0 %v141
  %166 = vmatprep.subr.bf16.mxu0 0
  %167 = vmatpush1.bf16.msra.mxu0 0
  %168 = vmatprep.subr.bf16.mxu0 0
  %169 = vmatpush1.bf16.msra.mxu0 0
  %170 = vmatprep.subr.bf16.mxu0 0
  %171 = vmatpush1.bf16.msra.mxu0 0
  %172 = vmatprep.subr.bf16.mxu0 0
  %173 = vmatpush1.bf16.msra.mxu0 0
  %174 = vmatprep.subr.bf16.mxu0 0
  %175 = vmatpush1.bf16.msra.mxu0 0
  %176 = vmatprep.subr.bf16.mxu0 0
  %177 = vmatpush1.bf16.msra.mxu0 0
  %178 = vmatprep.subr.bf16.mxu0 0
  %179 = vmatpush1.bf16.msra.mxu0 0
  %180 = vmatprep.subr.bf16.mxu0 0
  %181 = vmatpush1.bf16.msra.mxu0 0
  %182 = vmatprep.mubr.bf16.mxu0 0
  %183 = vmatmul.mubr.bf16.gmra.mrb[0].mxu0 %v84
  %v184 = vpop.f32.mrb[0].mxu0
  %v185 = vadd.f32 0.0, %v184
  %v186 = vpop.f32.mrb[0].mxu0
  %v187 = vpop.f32.mrb[0].mxu0
  %v188 = vadd.f32 0.0, %v187
  %v189 = vpop.f32.mrb[0].mxu0
  %190 = vmatprep.mubr.bf16.mxu0 0
  %191 = vmatmul.mubr.bf16.gmra.mrb[0].mxu0 %v85
  %v192 = vpop.f32.mrb[0].mxu0
  %v193 = vadd.f32 0.0, %v192
  %v194 = vpop.f32.mrb[0].mxu0
  %v195 = vpop.f32.mrb[0].mxu0
  %v196 = vadd.f32 0.0, %v195
  %v197 = vpop.f32.mrb[0].mxu0
  %198 = vdwg.mxu0
  %s199 = scalar_lea.vmem %s1, 64
  %v200 = vld [vmem:[%s199] sm:$0xf]
  %v201 = vld [vmem:[%s199 + $0x4] sm:$0xf]
  %v202 = vld [vmem:[%s199 + $0x8] sm:$0xf]
  %v203 = vld [vmem:[%s199 + $0xc] sm:$0xf]
  %v204 = vld [vmem:[%s199 + $0x10] sm:$0xf]
  %v205 = vld [vmem:[%s199 + $0x14] sm:$0xf]
  %v206 = vld [vmem:[%s199 + $0x18] sm:$0xf]
  %v207 = vld [vmem:[%s199 + $0x1c] sm:$0xf]
  %v208 = vld [vmem:[%s199 + $0x20] sm:$0xf]
  %v209 = vld [vmem:[%s199 + $0x24] sm:$0xf]
  %v210 = vld [vmem:[%s199 + $0x28] sm:$0xf]
  %v211 = vld [vmem:[%s199 + $0x2c] sm:$0xf]
  %v212 = vld [vmem:[%s199 + $0x30] sm:$0xf]
  %v213 = vld [vmem:[%s199 + $0x34] sm:$0xf]
  %v214 = vld [vmem:[%s199 + $0x38] sm:$0xf]
  %v215 = vld [vmem:[%s199 + $0x3c] sm:$0xf]
  %v232 = vunpack.c.l.b16 %v200
  %v233 = vunpack.c.l.b16 %v201
  %v234 = vunpack.c.l.b16 %v202
  %v235 = vunpack.c.l.b16 %v203
  %v236 = vunpack.c.l.b16 %v204
  %v237 = vunpack.c.l.b16 %v205
  %v238 = vunpack.c.l.b16 %v206
  %v239 = vunpack.c.l.b16 %v207
  %v240 = vunpack.c.l.b16 %v208
  %v241 = vunpack.c.l.b16 %v209
  %v242 = vunpack.c.l.b16 %v210
  %v243 = vunpack.c.l.b16 %v211
  %v244 = vunpack.c.l.b16 %v212
  %v245 = vunpack.c.l.b16 %v213
  %v246 = vunpack.c.l.b16 %v214
  %v247 = vunpack.c.l.b16 %v215
  %v248 = vpack.c.b16 %v233, %v232
  %v249 = vpack.c.b16 %v235, %v234
  %v250 = vpack.c.b16 %v237, %v236
  %v251 = vpack.c.b16 %v239, %v238
  %v252 = vpack.c.b16 %v241, %v240
  %v253 = vpack.c.b16 %v243, %v242
  %v254 = vpack.c.b16 %v245, %v244
  %v255 = vpack.c.b16 %v247, %v246
  %264 = vmatprep.subr.bf16.mxu0 0
  %265 = vmatpush1.bf16.msra.mxu0 %v248
  %266 = vmatprep.subr.bf16.mxu0 0
  %267 = vmatpush1.bf16.msra.mxu0 %v249
  %268 = vmatprep.subr.bf16.mxu0 0
  %269 = vmatpush1.bf16.msra.mxu0 %v250
  %270 = vmatprep.subr.bf16.mxu0 0
  %271 = vmatpush1.bf16.msra.mxu0 %v251
  %272 = vmatprep.subr.bf16.mxu0 0
  %273 = vmatpush1.bf16.msra.mxu0 %v252
  %274 = vmatprep.subr.bf16.mxu0 0
  %275 = vmatpush1.bf16.msra.mxu0 %v253
  %276 = vmatprep.subr.bf16.mxu0 0
  %277 = vmatpush1.bf16.msra.mxu0 %v254
  %278 = vmatprep.subr.bf16.mxu0 0
  %279 = vmatpush1.bf16.msra.mxu0 %v255
  %280 = vmatprep.subr.bf16.mxu0 0
  %281 = vmatpush1.bf16.msra.mxu0 0
  %282 = vmatprep.subr.bf16.mxu0 0
  %283 = vmatpush1.bf16.msra.mxu0 0
  %284 = vmatprep.subr.bf16.mxu0 0
  %285 = vmatpush1.bf16.msra.mxu0 0
  %286 = vmatprep.subr.bf16.mxu0 0
  %287 = vmatpush1.bf16.msra.mxu0 0
  %288 = vmatprep.subr.bf16.mxu0 0
  %289 = vmatpush1.bf16.msra.mxu0 0
  %290 = vmatprep.subr.bf16.mxu0 0
  %291 = vmatpush1.bf16.msra.mxu0 0
  %292 = vmatprep.subr.bf16.mxu0 0
  %293 = vmatpush1.bf16.msra.mxu0 0
  %294 = vmatprep.subr.bf16.mxu0 0
  %295 = vmatpush1.bf16.msra.mxu0 0
  %296 = vmatprep.mubr.bf16.mxu0 0
  %297 = vmatmul.mubr.bf16.gmra.mrb[0].mxu0 %v84
  %v298 = vpop.f32.mrb[0].mxu0
  %v299 = vadd.f32 0.0, %v298
  %v300 = vpop.f32.mrb[0].mxu0
  %v301 = vpop.f32.mrb[0].mxu0
  %v302 = vadd.f32 0.0, %v301
  %v303 = vpop.f32.mrb[0].mxu0
  %304 = vmatprep.mubr.bf16.mxu0 0
  %305 = vmatmul.mubr.bf16.gmra.mrb[0].mxu0 %v85
  %v306 = vpop.f32.mrb[0].mxu0
  %v307 = vadd.f32 0.0, %v306
  %v308 = vpop.f32.mrb[0].mxu0
  %v309 = vpop.f32.mrb[0].mxu0
  %v310 = vadd.f32 0.0, %v309
  %v311 = vpop.f32.mrb[0].mxu0
  %312 = vdwg.mxu0
  %vm313 = vcmp.lt.s32.totalorder %v28, 0
  %v314 = vsub.s32 0, %v28
  %v315 = vsel %vm313, %v314, %v28
  %v316 = vshrl.u32 %v315, 1
  %v317 = vand.u32 %v315, 1
  %v318 = vsub.s32 0, %v317
  %v319 = vsel %vm313, %v318, %v317
  %vm320 = vcmp.lt.s32.totalorder %v29, 0
  %v321 = vsub.s32 0, %v29
  %v322 = vsel %vm320, %v321, %v29
  %v323 = vshrl.u32 %v322, 1
  %v324 = vand.u32 %v322, 1
  %v325 = vsub.s32 0, %v324
  %v326 = vsel %vm320, %v325, %v324
  %vm327 = vcmp.lt.s32.totalorder %v30, 0
  %v328 = vsub.s32 0, %v30
  %v329 = vsel %vm327, %v328, %v30
  %v330 = vshrl.u32 %v329, 1
  %v331 = vand.u32 %v329, 1
  %v332 = vsub.s32 0, %v331
  %v333 = vsel %vm327, %v332, %v331
  %vm334 = vcmp.lt.s32.totalorder %v31, 0
  %v335 = vsub.s32 0, %v31
  %v336 = vsel %vm334, %v335, %v31
  %v337 = vshrl.u32 %v336, 1
  %v338 = vand.u32 %v336, 1
  %v339 = vsub.s32 0, %v338
  %v340 = vsel %vm334, %v339, %v338
  %vm341 = vcmp.ne.s32.totalorder %v319, 0
  %vm342 = vcmp.ne.s32.totalorder %v326, 0
  %vm343 = vcmp.ne.s32.totalorder %v333, 0
  %vm344 = vcmp.ne.s32.totalorder %v340, 0
  %vm345 = vcmp.lt.s32.totalorder %v319, 0
  %vm346 = vcmp.lt.s32.totalorder %v326, 0
  %vm347 = vcmp.lt.s32.totalorder %v333, 0
  %vm348 = vcmp.lt.s32.totalorder %v340, 0
  %vm349 = vmand %vm345, %vm341
  %vm350 = vmand %vm346, %vm342
  %vm351 = vmand %vm347, %vm343
  %vm352 = vmand %vm348, %vm344
  %v353 = vadd.s32 %v319, 2
  %v354 = vadd.s32 %v326, 2
  %v355 = vadd.s32 %v333, 2
  %v356 = vadd.s32 %v340, 2
  %v357 = vsel %vm349, %v353, %v319
  %v358 = vsel %vm350, %v354, %v326
  %v359 = vsel %vm351, %v355, %v333
  %v360 = vsel %vm352, %v356, %v340
  %vm361 = vcmp.eq.s32.totalorder %v357, 0
  %vm362 = vcmp.eq.s32.totalorder %v358, 0
  %vm363 = vcmp.eq.s32.totalorder %v359, 0
  %vm364 = vcmp.eq.s32.totalorder %v360, 0
  %v365 = vsel %vm361, %v185, %v299
  %v366 = vsel %vm362, %v188, %v302
  %v367 = vsel %vm363, %v193, %v307
  %v368 = vsel %vm364, %v196, %v310
  %v369 = vld [vmem:[%s2] sm:$0x1]
  %v371 = vlaneseq
  %v372 = vshrl.u32 %v371, 7
  %v373 = vsub.s32 0, %v372
  %v374 = vrot.slane %v369, %v373
  %v376 = vadd.f32 %v365, %v374
  %v377 = vadd.f32 %v366, %v374
  %v378 = vadd.f32 %v367, %v374
  %v379 = vadd.f32 %v368, %v374
  %v380 = vpack.c.bf16 %v377, %v376
  %v381 = vpack.c.bf16 %v379, %v378
  %v382 = vld [vmem:[%s3] sm:$0xff]
  %v383 = vld [vmem:[%s3 + $0x8] sm:$0xf]
  %v384 = vld [vmem:[%s3 + $0xc] sm:$0xff]
  %v385 = vld [vmem:[%s3 + $0x14] sm:$0xf]
  %v386 = vld [vmem:[%s3 + $0x18] sm:$0xff]
  %v387 = vld [vmem:[%s3 + $0x20] sm:$0xf]
  %v388 = vld [vmem:[%s3 + $0x24] sm:$0xff]
  %v389 = vld [vmem:[%s3 + $0x2c] sm:$0xf]
  %v390 = vld [vmem:[%s3 + $0x30] sm:$0xff]
  %v391 = vld [vmem:[%s3 + $0x38] sm:$0xf]
  %v392 = vld [vmem:[%s3 + $0x3c] sm:$0xff]
  %v393 = vld [vmem:[%s3 + $0x44] sm:$0xf]
  %v394 = vld [vmem:[%s3 + $0x48] sm:$0xff]
  %v395 = vld [vmem:[%s3 + $0x50] sm:$0xf]
  %v396 = vld [vmem:[%s3 + $0x54] sm:$0xff]
  %v397 = vld [vmem:[%s3 + $0x5c] sm:$0xf]
  %v398 = vld [vmem:[%s3 + $0x60] sm:$0xff]
  %v399 = vld [vmem:[%s3 + $0x68] sm:$0xf]
  %v400 = vld [vmem:[%s3 + $0x6c] sm:$0xff]
  %v401 = vld [vmem:[%s3 + $0x74] sm:$0xf]
  %v402 = vld [vmem:[%s3 + $0x78] sm:$0xff]
  %v403 = vld [vmem:[%s3 + $0x80] sm:$0xf]
  %v404 = vld [vmem:[%s3 + $0x84] sm:$0xff]
  %v405 = vld [vmem:[%s3 + $0x8c] sm:$0xf]
  %v406 = vld [vmem:[%s3 + $0x90] sm:$0xff]
  %v407 = vld [vmem:[%s3 + $0x98] sm:$0xf]
  %v408 = vld [vmem:[%s3 + $0x9c] sm:$0xff]
  %v409 = vld [vmem:[%s3 + $0xa4] sm:$0xf]
  %v410 = vld [vmem:[%s3 + $0xa8] sm:$0xff]
  %v411 = vld [vmem:[%s3 + $0xb0] sm:$0xf]
  %v412 = vld [vmem:[%s3 + $0xb4] sm:$0xff]
  %v413 = vld [vmem:[%s3 + $0xbc] sm:$0xf]
  %v446 = vunpack.c.l.b16 %v382
  %v447 = vunpack.c.h.b16 %v382
  %v448 = vunpack.c.l.b16 %v383
  %v449 = vunpack.c.l.b16 %v384
  %v450 = vunpack.c.h.b16 %v384
  %v451 = vunpack.c.l.b16 %v385
  %v452 = vunpack.c.l.b16 %v386
  %v453 = vunpack.c.h.b16 %v386
  %v454 = vunpack.c.l.b16 %v387
  %v455 = vunpack.c.l.b16 %v388
  %v456 = vunpack.c.h.b16 %v388
  %v457 = vunpack.c.l.b16 %v389
  %v458 = vunpack.c.l.b16 %v390
  %v459 = vunpack.c.h.b16 %v390
  %v460 = vunpack.c.l.b16 %v391
  %v461 = vunpack.c.l.b16 %v392
  %v462 = vunpack.c.h.b16 %v392
  %v463 = vunpack.c.l.b16 %v393
  %v464 = vunpack.c.l.b16 %v394
  %v465 = vunpack.c.h.b16 %v394
  %v466 = vunpack.c.l.b16 %v395
  %v467 = vunpack.c.l.b16 %v396
  %v468 = vunpack.c.h.b16 %v396
  %v469 = vunpack.c.l.b16 %v397
  %v470 = vunpack.c.l.b16 %v398
  %v471 = vunpack.c.h.b16 %v398
  %v472 = vunpack.c.l.b16 %v399
  %v473 = vunpack.c.l.b16 %v400
  %v474 = vunpack.c.h.b16 %v400
  %v475 = vunpack.c.l.b16 %v401
  %v476 = vunpack.c.l.b16 %v402
  %v477 = vunpack.c.h.b16 %v402
  %v478 = vunpack.c.l.b16 %v403
  %v479 = vunpack.c.l.b16 %v404
  %v480 = vunpack.c.h.b16 %v404
  %v481 = vunpack.c.l.b16 %v405
  %v482 = vunpack.c.l.b16 %v406
  %v483 = vunpack.c.h.b16 %v406
  %v484 = vunpack.c.l.b16 %v407
  %v485 = vunpack.c.l.b16 %v408
  %v486 = vunpack.c.h.b16 %v408
  %v487 = vunpack.c.l.b16 %v409
  %v488 = vunpack.c.l.b16 %v410
  %v489 = vunpack.c.h.b16 %v410
  %v490 = vunpack.c.l.b16 %v411
  %v491 = vunpack.c.l.b16 %v412
  %v492 = vunpack.c.h.b16 %v412
  %v493 = vunpack.c.l.b16 %v413
  %v494 = vpack.c.b16 %v449, %v446
  %v495 = vpack.c.b16 %v450, %v447
  %v496 = vpack.c.b16 %v451, %v448
  %v497 = vpack.c.b16 %v455, %v452
  %v498 = vpack.c.b16 %v456, %v453
  %v499 = vpack.c.b16 %v457, %v454
  %v500 = vpack.c.b16 %v461, %v458
  %v501 = vpack.c.b16 %v462, %v459
  %v502 = vpack.c.b16 %v463, %v460
  %v503 = vpack.c.b16 %v467, %v464
  %v504 = vpack.c.b16 %v468, %v465
  %v505 = vpack.c.b16 %v469, %v466
  %v506 = vpack.c.b16 %v473, %v470
  %v507 = vpack.c.b16 %v474, %v471
  %v508 = vpack.c.b16 %v475, %v472
  %v509 = vpack.c.b16 %v479, %v476
  %v510 = vpack.c.b16 %v480, %v477
  %v511 = vpack.c.b16 %v481, %v478
  %v512 = vpack.c.b16 %v485, %v482
  %v513 = vpack.c.b16 %v486, %v483
  %v514 = vpack.c.b16 %v487, %v484
  %v515 = vpack.c.b16 %v491, %v488
  %v516 = vpack.c.b16 %v492, %v489
  %v517 = vpack.c.b16 %v493, %v490
  %542 = vmatprep.subr.bf16.mxu0 %v495
  %543 = vmatpush1.bf16.msra.mxu0 %v494
  %544 = vmatprep.subr.bf16.mxu0 %v498
  %545 = vmatpush1.bf16.msra.mxu0 %v497
  %546 = vmatprep.subr.bf16.mxu0 %v501
  %547 = vmatpush1.bf16.msra.mxu0 %v500
  %548 = vmatprep.subr.bf16.mxu0 %v504
  %549 = vmatpush1.bf16.msra.mxu0 %v503
  %550 = vmatprep.subr.bf16.mxu0 %v507
  %551 = vmatpush1.bf16.msra.mxu0 %v506
  %552 = vmatprep.subr.bf16.mxu0 %v510
  %553 = vmatpush1.bf16.msra.mxu0 %v509
  %554 = vmatprep.subr.bf16.mxu0 %v513
  %555 = vmatpush1.bf16.msra.mxu0 %v512
  %556 = vmatprep.subr.bf16.mxu0 %v516
  %557 = vmatpush1.bf16.msra.mxu0 %v515
  %558 = vmatprep.subr.bf16.mxu0 0
  %559 = vmatpush1.bf16.msra.mxu0 0
  %560 = vmatprep.subr.bf16.mxu0 0
  %561 = vmatpush1.bf16.msra.mxu0 0
  %562 = vmatprep.subr.bf16.mxu0 0
  %563 = vmatpush1.bf16.msra.mxu0 0
  %564 = vmatprep.subr.bf16.mxu0 0
  %565 = vmatpush1.bf16.msra.mxu0 0
  %566 = vmatprep.subr.bf16.mxu0 0
  %567 = vmatpush1.bf16.msra.mxu0 0
  %568 = vmatprep.subr.bf16.mxu0 0
  %569 = vmatpush1.bf16.msra.mxu0 0
  %570 = vmatprep.subr.bf16.mxu0 0
  %571 = vmatpush1.bf16.msra.mxu0 0
  %572 = vmatprep.subr.bf16.mxu0 0
  %573 = vmatpush1.bf16.msra.mxu0 0
  %574 = vmatprep.mubr.bf16.mxu0 0
  %575 = vmatmul.mubr.bf16.gmra.mrb[0].mxu0 %v380
  %v576 = vpop.f32.mrb[0].mxu0
  %v577 = vadd.f32 0.0, %v576
  %v578 = vpop.f32.mrb[0].mxu0
  %v579 = vadd.f32 0.0, %v578
  %v580 = vpop.f32.mrb[0].mxu0
  %v581 = vadd.f32 0.0, %v580
  %v582 = vpop.f32.mrb[0].mxu0
  %v583 = vadd.f32 0.0, %v582
  %584 = vmatprep.mubr.bf16.mxu0 0
  %585 = vmatmul.mubr.bf16.gmra.mrb[0].mxu0 %v381
  %v586 = vpop.f32.mrb[0].mxu0
  %v587 = vadd.f32 0.0, %v586
  %v588 = vpop.f32.mrb[0].mxu0
  %v589 = vadd.f32 0.0, %v588
  %v590 = vpop.f32.mrb[0].mxu0
  %v591 = vadd.f32 0.0, %v590
  %v592 = vpop.f32.mrb[0].mxu0
  %v593 = vadd.f32 0.0, %v592
  %594 = vdwg.mxu0
  %595 = vmatprep.subr.bf16.mxu0 0
  %596 = vmatpush1.bf16.msra.mxu0 %v496
  %597 = vmatprep.subr.bf16.mxu0 0
  %598 = vmatpush1.bf16.msra.mxu0 %v499
  %599 = vmatprep.subr.bf16.mxu0 0
  %600 = vmatpush1.bf16.msra.mxu0 %v502
  %601 = vmatprep.subr.bf16.mxu0 0
  %602 = vmatpush1.bf16.msra.mxu0 %v505
  %603 = vmatprep.subr.bf16.mxu0 0
  %604 = vmatpush1.bf16.msra.mxu0 %v508
  %605 = vmatprep.subr.bf16.mxu0 0
  %606 = vmatpush1.bf16.msra.mxu0 %v511
  %607 = vmatprep.subr.bf16.mxu0 0
  %608 = vmatpush1.bf16.msra.mxu0 %v514
  %609 = vmatprep.subr.bf16.mxu0 0
  %610 = vmatpush1.bf16.msra.mxu0 %v517
  %611 = vmatprep.subr.bf16.mxu0 0
  %612 = vmatpush1.bf16.msra.mxu0 0
  %613 = vmatprep.subr.bf16.mxu0 0
  %614 = vmatpush1.bf16.msra.mxu0 0
  %615 = vmatprep.subr.bf16.mxu0 0
  %616 = vmatpush1.bf16.msra.mxu0 0
  %617 = vmatprep.subr.bf16.mxu0 0
  %618 = vmatpush1.bf16.msra.mxu0 0
  %619 = vmatprep.subr.bf16.mxu0 0
  %620 = vmatpush1.bf16.msra.mxu0 0
  %621 = vmatprep.subr.bf16.mxu0 0
  %622 = vmatpush1.bf16.msra.mxu0 0
  %623 = vmatprep.subr.bf16.mxu0 0
  %624 = vmatpush1.bf16.msra.mxu0 0
  %625 = vmatprep.subr.bf16.mxu0 0
  %626 = vmatpush1.bf16.msra.mxu0 0
  %627 = vmatprep.mubr.bf16.mxu0 0
  %628 = vmatmul.mubr.bf16.gmra.mrb[0].mxu0 %v380
  %v629 = vpop.f32.mrb[0].mxu0
  %v630 = vadd.f32 0.0, %v629
  %v631 = vpop.f32.mrb[0].mxu0
  %v632 = vpop.f32.mrb[0].mxu0
  %v633 = vadd.f32 0.0, %v632
  %v634 = vpop.f32.mrb[0].mxu0
  %635 = vmatprep.mubr.bf16.mxu0 0
  %636 = vmatmul.mubr.bf16.gmra.mrb[0].mxu0 %v381
  %v637 = vpop.f32.mrb[0].mxu0
  %v638 = vadd.f32 0.0, %v637
  %v639 = vpop.f32.mrb[0].mxu0
  %v640 = vpop.f32.mrb[0].mxu0
  %v641 = vadd.f32 0.0, %v640
  %v642 = vpop.f32.mrb[0].mxu0
  %643 = vdwg.mxu0
  %vm648 = vcmask 1040384
  %v649 = vrot.slane %v577, 7
  %v650 = vrot.slane %v581, 7
  %v651 = vsel %vm648, %v649, %v650
  %v652 = vrot.slane %v587, 7
  %v653 = vsel %vm648, %v650, %v652
  %v654 = vrot.slane %v591, 7
  %v655 = vsel %vm648, %v652, %v654
  %v660 = vsel %vm648, 0.0, %v649
  %vm661 = vcmp.eq.s32.totalorder %v76, 0
  %vm662 = vcmp.eq.s32.totalorder %v77, 0
  %vm663 = vcmp.eq.s32.totalorder %v78, 0
  %vm664 = vcmp.eq.s32.totalorder %v79, 0
  %v665 = vsel %vm661, 0.0, %v660
  %v666 = vsel %vm662, 0.0, %v651
  %v667 = vsel %vm663, 0.0, %v653
  %v668 = vsel %vm664, 0.0, %v655
  %vm673 = vcmask 1046528
  %v674 = vrot.slane %v630, 1
  %v675 = vrot.slane %v633, 1
  %v676 = vsel %vm673, %v674, %v675
  %v677 = vrot.slane %v638, 1
  %v678 = vsel %vm673, %v675, %v677
  %v679 = vrot.slane %v641, 1
  %v680 = vsel %vm673, %v677, %v679
  %v685 = vsel %vm673, %v679, 0.0
  %vm686 = vcmp.eq.s32.totalorder %v76, 15
  %vm687 = vcmp.eq.s32.totalorder %v77, 15
  %vm688 = vcmp.eq.s32.totalorder %v78, 15
  %vm689 = vcmp.eq.s32.totalorder %v79, 15
  %v690 = vsel %vm686, 0.0, %v676
  %v691 = vsel %vm687, 0.0, %v678
  %v692 = vsel %vm688, 0.0, %v680
  %v693 = vsel %vm689, 0.0, %v685
  %v694 = vadd.f32 %v665, %v579
  %v695 = vadd.f32 %v666, %v583
  %v696 = vadd.f32 %v667, %v589
  %v697 = vadd.f32 %v668, %v593
  %v698 = vadd.f32 %v694, %v690
  %v699 = vadd.f32 %v695, %v691
  %v700 = vadd.f32 %v696, %v692
  %v701 = vadd.f32 %v697, %v693
  %v702 = vld [vmem:[%s4] sm:$0x1]
  %v704 = vlaneseq
  %v705 = vshrl.u32 %v704, 7
  %v706 = vsub.s32 0, %v705
  %v707 = vrot.slane %v702, %v706
  %v709 = vadd.f32 %v698, %v707
  %v710 = vadd.f32 %v699, %v707
  %v711 = vadd.f32 %v700, %v707
  %v712 = vadd.f32 %v701, %v707
  %v713 = vadd.f32 %v709, %v710
  %v714 = vadd.f32 %v713, %v711
  %v715 = vadd.f32 %v714, %v712
  %v716 = vrot.slane %v715, 4
  %v717 = vadd.f32 %v715, %v716
  %v718 = vrot.slane %v717, 2
  %v719 = vadd.f32 %v717, %v718
  %v720 = vrot.slane %v719, 1
  %v721 = vadd.f32 %v719, %v720
  %722 = vrot.lane.b32.xlu0 %v721, 8
  %v723 = vpop.permute.xlu0 %722
  %v724 = vadd.f32 %v721, %v723
  %725 = vrot.lane.b32.xlu0 %v724, 16
  %v726 = vpop.permute.xlu0 %725
  %v727 = vadd.f32 %v724, %v726
  %728 = vrot.lane.b32.xlu0 %v727, 32
  %v729 = vpop.permute.xlu0 %728
  %v730 = vadd.f32 %v727, %v729
  %731 = vrot.lane.b32.xlu0 %v730, 64
  %v732 = vpop.permute.xlu0 %731
  %v733 = vadd.f32 %v730, %v732
  %v734 = vmul.f32 %v733, 0.001953125
  %v735 = vlaneseq
  %v736 = vshrl.u32 %v735, 7
  %v737 = vsub.s32 0, %v736
  %v738 = vrot.slane %v734, %v737
  %v739 = vsub.f32 %v709, %v738
  %v740 = vsub.f32 %v710, %v738
  %v741 = vsub.f32 %v711, %v738
  %v742 = vsub.f32 %v712, %v738
  %v743 = vmul.f32 %v739, %v739
  %v744 = vmul.f32 %v740, %v740
  %v745 = vmul.f32 %v741, %v741
  %v746 = vmul.f32 %v742, %v742
  %v747 = vadd.f32 %v743, %v744
  %v748 = vadd.f32 %v747, %v745
  %v749 = vadd.f32 %v748, %v746
  %v750 = vrot.slane %v749, 4
  %v751 = vadd.f32 %v749, %v750
  %v752 = vrot.slane %v751, 2
  %v753 = vadd.f32 %v751, %v752
  %v754 = vrot.slane %v753, 1
  %v755 = vadd.f32 %v753, %v754
  %756 = vrot.lane.b32.xlu0 %v755, 8
  %v757 = vpop.permute.xlu0 %756
  %v758 = vadd.f32 %v755, %v757
  %759 = vrot.lane.b32.xlu0 %v758, 16
  %v760 = vpop.permute.xlu0 %759
  %v761 = vadd.f32 %v758, %v760
  %762 = vrot.lane.b32.xlu0 %v761, 32
  %v763 = vpop.permute.xlu0 %762
  %v764 = vadd.f32 %v761, %v763
  %765 = vrot.lane.b32.xlu0 %v764, 64
  %v766 = vpop.permute.xlu0 %765
  %v767 = vadd.f32 %v764, %v766
  %v768 = vmul.f32 %v767, 0.001953125
  %v769 = vld [vmem:[%s5] sm:$0x1]
  %v770 = vadd.f32 %v768, 1e-05
  %v771 = vrsqrt.pop %v770
  %v772 = vmul.f32 %v769, %v771
  %v774 = vlaneseq
  %v775 = vshrl.u32 %v774, 7
  %v776 = vsub.s32 0, %v775
  %v777 = vrot.slane %v772, %v776
  %v779 = vmul.f32 %v739, %v777
  %v780 = vmul.f32 %v740, %v777
  %v781 = vmul.f32 %v741, %v777
  %v782 = vmul.f32 %v742, %v777
  %v783 = vld [vmem:[%s6] sm:$0x1]
  %v785 = vlaneseq
  %v786 = vshrl.u32 %v785, 7
  %v787 = vsub.s32 0, %v786
  %v788 = vrot.slane %v783, %v787
  %v790 = vadd.f32 %v779, %v788
  %v791 = vadd.f32 %v780, %v788
  %v792 = vadd.f32 %v781, %v788
  %v793 = vadd.f32 %v782, %v788
  %v794 = vmul.f32 %v790, 0.5
  %v795 = vmul.f32 %v791, 0.5
  %v796 = vmul.f32 %v792, 0.5
  %v797 = vmul.f32 %v793, 0.5
  %v798 = vmul.f32 %v790, 0.70710677
  %v799 = vmul.f32 %v791, 0.70710677
  %v800 = vmul.f32 %v792, 0.70710677
  %v801 = vmul.f32 %v793, 0.70710677
  %v802 = verf.f32.pop %v798
  %v803 = verf.f32.pop %v799
  %v804 = verf.f32.pop %v800
  %v805 = verf.f32.pop %v801
  %v806 = vadd.f32 %v802, 1.0
  %v807 = vadd.f32 %v803, 1.0
  %v808 = vadd.f32 %v804, 1.0
  %v809 = vadd.f32 %v805, 1.0
  %v810 = vmul.f32 %v794, %v806
  %v811 = vmul.f32 %v795, %v807
  %v812 = vmul.f32 %v796, %v808
  %v813 = vmul.f32 %v797, %v809
  %v814 = vpack.c.bf16 %v811, %v810
  %v815 = vpack.c.bf16 %v813, %v812
  %s816 = scalar_lea.vmem %s3, 192
  %v817 = vld [vmem:[%s816] sm:$0xff]
  %v818 = vld [vmem:[%s816 + $0x8] sm:$0xf]
  %v819 = vld [vmem:[%s816 + $0xc] sm:$0xff]
  %v820 = vld [vmem:[%s816 + $0x14] sm:$0xf]
  %v821 = vld [vmem:[%s816 + $0x18] sm:$0xff]
  %v822 = vld [vmem:[%s816 + $0x20] sm:$0xf]
  %v823 = vld [vmem:[%s816 + $0x24] sm:$0xff]
  %v824 = vld [vmem:[%s816 + $0x2c] sm:$0xf]
  %v825 = vld [vmem:[%s816 + $0x30] sm:$0xff]
  %v826 = vld [vmem:[%s816 + $0x38] sm:$0xf]
  %v827 = vld [vmem:[%s816 + $0x3c] sm:$0xff]
  %v828 = vld [vmem:[%s816 + $0x44] sm:$0xf]
  %v829 = vld [vmem:[%s816 + $0x48] sm:$0xff]
  %v830 = vld [vmem:[%s816 + $0x50] sm:$0xf]
  %v831 = vld [vmem:[%s816 + $0x54] sm:$0xff]
  %v832 = vld [vmem:[%s816 + $0x5c] sm:$0xf]
  %v833 = vld [vmem:[%s816 + $0x60] sm:$0xff]
  %v834 = vld [vmem:[%s816 + $0x68] sm:$0xf]
  %v835 = vld [vmem:[%s816 + $0x6c] sm:$0xff]
  %v836 = vld [vmem:[%s816 + $0x74] sm:$0xf]
  %v837 = vld [vmem:[%s816 + $0x78] sm:$0xff]
  %v838 = vld [vmem:[%s816 + $0x80] sm:$0xf]
  %v839 = vld [vmem:[%s816 + $0x84] sm:$0xff]
  %v840 = vld [vmem:[%s816 + $0x8c] sm:$0xf]
  %v841 = vld [vmem:[%s816 + $0x90] sm:$0xff]
  %v842 = vld [vmem:[%s816 + $0x98] sm:$0xf]
  %v843 = vld [vmem:[%s816 + $0x9c] sm:$0xff]
  %v844 = vld [vmem:[%s816 + $0xa4] sm:$0xf]
  %v845 = vld [vmem:[%s816 + $0xa8] sm:$0xff]
  %v846 = vld [vmem:[%s816 + $0xb0] sm:$0xf]
  %v847 = vld [vmem:[%s816 + $0xb4] sm:$0xff]
  %v848 = vld [vmem:[%s816 + $0xbc] sm:$0xf]
  %v881 = vunpack.c.l.b16 %v817
  %v882 = vunpack.c.h.b16 %v817
  %v883 = vunpack.c.l.b16 %v818
  %v884 = vunpack.c.l.b16 %v819
  %v885 = vunpack.c.h.b16 %v819
  %v886 = vunpack.c.l.b16 %v820
  %v887 = vunpack.c.l.b16 %v821
  %v888 = vunpack.c.h.b16 %v821
  %v889 = vunpack.c.l.b16 %v822
  %v890 = vunpack.c.l.b16 %v823
  %v891 = vunpack.c.h.b16 %v823
  %v892 = vunpack.c.l.b16 %v824
  %v893 = vunpack.c.l.b16 %v825
  %v894 = vunpack.c.h.b16 %v825
  %v895 = vunpack.c.l.b16 %v826
  %v896 = vunpack.c.l.b16 %v827
  %v897 = vunpack.c.h.b16 %v827
  %v898 = vunpack.c.l.b16 %v828
  %v899 = vunpack.c.l.b16 %v829
  %v900 = vunpack.c.h.b16 %v829
  %v901 = vunpack.c.l.b16 %v830
  %v902 = vunpack.c.l.b16 %v831
  %v903 = vunpack.c.h.b16 %v831
  %v904 = vunpack.c.l.b16 %v832
  %v905 = vunpack.c.l.b16 %v833
  %v906 = vunpack.c.h.b16 %v833
  %v907 = vunpack.c.l.b16 %v834
  %v908 = vunpack.c.l.b16 %v835
  %v909 = vunpack.c.h.b16 %v835
  %v910 = vunpack.c.l.b16 %v836
  %v911 = vunpack.c.l.b16 %v837
  %v912 = vunpack.c.h.b16 %v837
  %v913 = vunpack.c.l.b16 %v838
  %v914 = vunpack.c.l.b16 %v839
  %v915 = vunpack.c.h.b16 %v839
  %v916 = vunpack.c.l.b16 %v840
  %v917 = vunpack.c.l.b16 %v841
  %v918 = vunpack.c.h.b16 %v841
  %v919 = vunpack.c.l.b16 %v842
  %v920 = vunpack.c.l.b16 %v843
  %v921 = vunpack.c.h.b16 %v843
  %v922 = vunpack.c.l.b16 %v844
  %v923 = vunpack.c.l.b16 %v845
  %v924 = vunpack.c.h.b16 %v845
  %v925 = vunpack.c.l.b16 %v846
  %v926 = vunpack.c.l.b16 %v847
  %v927 = vunpack.c.h.b16 %v847
  %v928 = vunpack.c.l.b16 %v848
  %v929 = vpack.c.b16 %v884, %v881
  %v930 = vpack.c.b16 %v885, %v882
  %v931 = vpack.c.b16 %v886, %v883
  %v932 = vpack.c.b16 %v890, %v887
  %v933 = vpack.c.b16 %v891, %v888
  %v934 = vpack.c.b16 %v892, %v889
  %v935 = vpack.c.b16 %v896, %v893
  %v936 = vpack.c.b16 %v897, %v894
  %v937 = vpack.c.b16 %v898, %v895
  %v938 = vpack.c.b16 %v902, %v899
  %v939 = vpack.c.b16 %v903, %v900
  %v940 = vpack.c.b16 %v904, %v901
  %v941 = vpack.c.b16 %v908, %v905
  %v942 = vpack.c.b16 %v909, %v906
  %v943 = vpack.c.b16 %v910, %v907
  %v944 = vpack.c.b16 %v914, %v911
  %v945 = vpack.c.b16 %v915, %v912
  %v946 = vpack.c.b16 %v916, %v913
  %v947 = vpack.c.b16 %v920, %v917
  %v948 = vpack.c.b16 %v921, %v918
  %v949 = vpack.c.b16 %v922, %v919
  %v950 = vpack.c.b16 %v926, %v923
  %v951 = vpack.c.b16 %v927, %v924
  %v952 = vpack.c.b16 %v928, %v925
  %977 = vmatprep.subr.bf16.mxu0 %v930
  %978 = vmatpush1.bf16.msra.mxu0 %v929
  %979 = vmatprep.subr.bf16.mxu0 %v933
  %980 = vmatpush1.bf16.msra.mxu0 %v932
  %981 = vmatprep.subr.bf16.mxu0 %v936
  %982 = vmatpush1.bf16.msra.mxu0 %v935
  %983 = vmatprep.subr.bf16.mxu0 %v939
  %984 = vmatpush1.bf16.msra.mxu0 %v938
  %985 = vmatprep.subr.bf16.mxu0 %v942
  %986 = vmatpush1.bf16.msra.mxu0 %v941
  %987 = vmatprep.subr.bf16.mxu0 %v945
  %988 = vmatpush1.bf16.msra.mxu0 %v944
  %989 = vmatprep.subr.bf16.mxu0 %v948
  %990 = vmatpush1.bf16.msra.mxu0 %v947
  %991 = vmatprep.subr.bf16.mxu0 %v951
  %992 = vmatpush1.bf16.msra.mxu0 %v950
  %993 = vmatprep.subr.bf16.mxu0 0
  %994 = vmatpush1.bf16.msra.mxu0 0
  %995 = vmatprep.subr.bf16.mxu0 0
  %996 = vmatpush1.bf16.msra.mxu0 0
  %997 = vmatprep.subr.bf16.mxu0 0
  %998 = vmatpush1.bf16.msra.mxu0 0
  %999 = vmatprep.subr.bf16.mxu0 0
  %1000 = vmatpush1.bf16.msra.mxu0 0
  %1001 = vmatprep.subr.bf16.mxu0 0
  %1002 = vmatpush1.bf16.msra.mxu0 0
  %1003 = vmatprep.subr.bf16.mxu0 0
  %1004 = vmatpush1.bf16.msra.mxu0 0
  %1005 = vmatprep.subr.bf16.mxu0 0
  %1006 = vmatpush1.bf16.msra.mxu0 0
  %1007 = vmatprep.subr.bf16.mxu0 0
  %1008 = vmatpush1.bf16.msra.mxu0 0
  %1009 = vmatprep.mubr.bf16.mxu0 0
  %1010 = vmatmul.mubr.bf16.gmra.mrb[0].mxu0 %v814
  %v1011 = vpop.f32.mrb[0].mxu0
  %v1012 = vadd.f32 0.0, %v1011
  %v1013 = vpop.f32.mrb[0].mxu0
  %v1014 = vadd.f32 0.0, %v1013
  %v1015 = vpop.f32.mrb[0].mxu0
  %v1016 = vadd.f32 0.0, %v1015
  %v1017 = vpop.f32.mrb[0].mxu0
  %v1018 = vadd.f32 0.0, %v1017
  %1019 = vmatprep.mubr.bf16.mxu0 0
  %1020 = vmatmul.mubr.bf16.gmra.mrb[0].mxu0 %v815
  %v1021 = vpop.f32.mrb[0].mxu0
  %v1022 = vadd.f32 0.0, %v1021
  %v1023 = vpop.f32.mrb[0].mxu0
  %v1024 = vadd.f32 0.0, %v1023
  %v1025 = vpop.f32.mrb[0].mxu0
  %v1026 = vadd.f32 0.0, %v1025
  %v1027 = vpop.f32.mrb[0].mxu0
  %v1028 = vadd.f32 0.0, %v1027
  %1029 = vdwg.mxu0
  %1030 = vmatprep.subr.bf16.mxu0 0
  %1031 = vmatpush1.bf16.msra.mxu0 %v931
  %1032 = vmatprep.subr.bf16.mxu0 0
  %1033 = vmatpush1.bf16.msra.mxu0 %v934
  %1034 = vmatprep.subr.bf16.mxu0 0
  %1035 = vmatpush1.bf16.msra.mxu0 %v937
  %1036 = vmatprep.subr.bf16.mxu0 0
  %1037 = vmatpush1.bf16.msra.mxu0 %v940
  %1038 = vmatprep.subr.bf16.mxu0 0
  %1039 = vmatpush1.bf16.msra.mxu0 %v943
  %1040 = vmatprep.subr.bf16.mxu0 0
  %1041 = vmatpush1.bf16.msra.mxu0 %v946
  %1042 = vmatprep.subr.bf16.mxu0 0
  %1043 = vmatpush1.bf16.msra.mxu0 %v949
  %1044 = vmatprep.subr.bf16.mxu0 0
  %1045 = vmatpush1.bf16.msra.mxu0 %v952
  %1046 = vmatprep.subr.bf16.mxu0 0
  %1047 = vmatpush1.bf16.msra.mxu0 0
  %1048 = vmatprep.subr.bf16.mxu0 0
  %1049 = vmatpush1.bf16.msra.mxu0 0
  %1050 = vmatprep.subr.bf16.mxu0 0
  %1051 = vmatpush1.bf16.msra.mxu0 0
  %1052 = vmatprep.subr.bf16.mxu0 0
  %1053 = vmatpush1.bf16.msra.mxu0 0
  %1054 = vmatprep.subr.bf16.mxu0 0
  %1055 = vmatpush1.bf16.msra.mxu0 0
  %1056 = vmatprep.subr.bf16.mxu0 0
  %1057 = vmatpush1.bf16.msra.mxu0 0
  %1058 = vmatprep.subr.bf16.mxu0 0
  %1059 = vmatpush1.bf16.msra.mxu0 0
  %1060 = vmatprep.subr.bf16.mxu0 0
  %1061 = vmatpush1.bf16.msra.mxu0 0
  %1062 = vmatprep.mubr.bf16.mxu0 0
  %1063 = vmatmul.mubr.bf16.gmra.mrb[0].mxu0 %v814
  %v1064 = vpop.f32.mrb[0].mxu0
  %v1065 = vadd.f32 0.0, %v1064
  %v1066 = vpop.f32.mrb[0].mxu0
  %v1067 = vpop.f32.mrb[0].mxu0
  %v1068 = vadd.f32 0.0, %v1067
  %v1069 = vpop.f32.mrb[0].mxu0
  %1070 = vmatprep.mubr.bf16.mxu0 0
  %1071 = vmatmul.mubr.bf16.gmra.mrb[0].mxu0 %v815
  %v1072 = vpop.f32.mrb[0].mxu0
  %v1073 = vadd.f32 0.0, %v1072
  %v1074 = vpop.f32.mrb[0].mxu0
  %v1075 = vpop.f32.mrb[0].mxu0
  %v1076 = vadd.f32 0.0, %v1075
  %v1077 = vpop.f32.mrb[0].mxu0
  %1078 = vdwg.mxu0
  %v1083 = vrot.slane %v1012, 7
  %v1084 = vrot.slane %v1016, 7
  %v1085 = vsel %vm648, %v1083, %v1084
  %v1086 = vrot.slane %v1022, 7
  %v1087 = vsel %vm648, %v1084, %v1086
  %v1088 = vrot.slane %v1026, 7
  %v1089 = vsel %vm648, %v1086, %v1088
  %v1094 = vsel %vm648, 0.0, %v1083
  %v1095 = vsel %vm661, 0.0, %v1094
  %v1096 = vsel %vm662, 0.0, %v1085
  %v1097 = vsel %vm663, 0.0, %v1087
  %v1098 = vsel %vm664, 0.0, %v1089
  %v1103 = vrot.slane %v1065, 1
  %v1104 = vrot.slane %v1068, 1
  %v1105 = vsel %vm673, %v1103, %v1104
  %v1106 = vrot.slane %v1073, 1
  %v1107 = vsel %vm673, %v1104, %v1106
  %v1108 = vrot.slane %v1076, 1
  %v1109 = vsel %vm673, %v1106, %v1108
  %v1114 = vsel %vm673, %v1108, 0.0
  %v1115 = vsel %vm686, 0.0, %v1105
  %v1116 = vsel %vm687, 0.0, %v1107
  %v1117 = vsel %vm688, 0.0, %v1109
  %v1118 = vsel %vm689, 0.0, %v1114
  %v1119 = vadd.f32 %v1095, %v1014
  %v1120 = vadd.f32 %v1096, %v1018
  %v1121 = vadd.f32 %v1097, %v1024
  %v1122 = vadd.f32 %v1098, %v1028
  %v1123 = vadd.f32 %v1119, %v1115
  %v1124 = vadd.f32 %v1120, %v1116
  %v1125 = vadd.f32 %v1121, %v1117
  %v1126 = vadd.f32 %v1122, %v1118
  %s1127 = scalar_lea.vmem %s4, 1
  %v1128 = vld [vmem:[%s1127] sm:$0x1]
  %v1130 = vlaneseq
  %v1131 = vshrl.u32 %v1130, 7
  %v1132 = vsub.s32 0, %v1131
  %v1133 = vrot.slane %v1128, %v1132
  %v1135 = vadd.f32 %v1123, %v1133
  %v1136 = vadd.f32 %v1124, %v1133
  %v1137 = vadd.f32 %v1125, %v1133
  %v1138 = vadd.f32 %v1126, %v1133
  %v1139 = vadd.f32 %v1135, %v1136
  %v1140 = vadd.f32 %v1139, %v1137
  %v1141 = vadd.f32 %v1140, %v1138
  %v1142 = vrot.slane %v1141, 4
  %v1143 = vadd.f32 %v1141, %v1142
  %v1144 = vrot.slane %v1143, 2
  %v1145 = vadd.f32 %v1143, %v1144
  %v1146 = vrot.slane %v1145, 1
  %v1147 = vadd.f32 %v1145, %v1146
  %1148 = vrot.lane.b32.xlu0 %v1147, 8
  %v1149 = vpop.permute.xlu0 %1148
  %v1150 = vadd.f32 %v1147, %v1149
  %1151 = vrot.lane.b32.xlu0 %v1150, 16
  %v1152 = vpop.permute.xlu0 %1151
  %v1153 = vadd.f32 %v1150, %v1152
  %1154 = vrot.lane.b32.xlu0 %v1153, 32
  %v1155 = vpop.permute.xlu0 %1154
  %v1156 = vadd.f32 %v1153, %v1155
  %1157 = vrot.lane.b32.xlu0 %v1156, 64
  %v1158 = vpop.permute.xlu0 %1157
  %v1159 = vadd.f32 %v1156, %v1158
  %v1160 = vmul.f32 %v1159, 0.001953125
  %v1161 = vlaneseq
  %v1162 = vshrl.u32 %v1161, 7
  %v1163 = vsub.s32 0, %v1162
  %v1164 = vrot.slane %v1160, %v1163
  %v1165 = vsub.f32 %v1135, %v1164
  %v1166 = vsub.f32 %v1136, %v1164
  %v1167 = vsub.f32 %v1137, %v1164
  %v1168 = vsub.f32 %v1138, %v1164
  %v1169 = vmul.f32 %v1165, %v1165
  %v1170 = vmul.f32 %v1166, %v1166
  %v1171 = vmul.f32 %v1167, %v1167
  %v1172 = vmul.f32 %v1168, %v1168
  %v1173 = vadd.f32 %v1169, %v1170
  %v1174 = vadd.f32 %v1173, %v1171
  %v1175 = vadd.f32 %v1174, %v1172
  %v1176 = vrot.slane %v1175, 4
  %v1177 = vadd.f32 %v1175, %v1176
  %v1178 = vrot.slane %v1177, 2
  %v1179 = vadd.f32 %v1177, %v1178
  %v1180 = vrot.slane %v1179, 1
  %v1181 = vadd.f32 %v1179, %v1180
  %1182 = vrot.lane.b32.xlu0 %v1181, 8
  %v1183 = vpop.permute.xlu0 %1182
  %v1184 = vadd.f32 %v1181, %v1183
  %1185 = vrot.lane.b32.xlu0 %v1184, 16
  %v1186 = vpop.permute.xlu0 %1185
  %v1187 = vadd.f32 %v1184, %v1186
  %1188 = vrot.lane.b32.xlu0 %v1187, 32
  %v1189 = vpop.permute.xlu0 %1188
  %v1190 = vadd.f32 %v1187, %v1189
  %1191 = vrot.lane.b32.xlu0 %v1190, 64
  %v1192 = vpop.permute.xlu0 %1191
  %v1193 = vadd.f32 %v1190, %v1192
  %v1194 = vmul.f32 %v1193, 0.001953125
  %s1195 = scalar_lea.vmem %s5, 1
  %v1196 = vld [vmem:[%s1195] sm:$0x1]
  %v1197 = vadd.f32 %v1194, 1e-05
  %v1198 = vrsqrt.pop %v1197
  %v1199 = vmul.f32 %v1196, %v1198
  %v1201 = vlaneseq
  %v1202 = vshrl.u32 %v1201, 7
  %v1203 = vsub.s32 0, %v1202
  %v1204 = vrot.slane %v1199, %v1203
  %v1206 = vmul.f32 %v1165, %v1204
  %v1207 = vmul.f32 %v1166, %v1204
  %v1208 = vmul.f32 %v1167, %v1204
  %v1209 = vmul.f32 %v1168, %v1204
  %s1210 = scalar_lea.vmem %s6, 1
  %v1211 = vld [vmem:[%s1210] sm:$0x1]
  %v1213 = vlaneseq
  %v1214 = vshrl.u32 %v1213, 7
  %v1215 = vsub.s32 0, %v1214
  %v1216 = vrot.slane %v1211, %v1215
  %v1218 = vadd.f32 %v1206, %v1216
  %v1219 = vadd.f32 %v1207, %v1216
  %v1220 = vadd.f32 %v1208, %v1216
  %v1221 = vadd.f32 %v1209, %v1216
  %v1222 = vmul.f32 %v1218, 0.5
  %v1223 = vmul.f32 %v1219, 0.5
  %v1224 = vmul.f32 %v1220, 0.5
  %v1225 = vmul.f32 %v1221, 0.5
  %v1226 = vmul.f32 %v1218, 0.70710677
  %v1227 = vmul.f32 %v1219, 0.70710677
  %v1228 = vmul.f32 %v1220, 0.70710677
  %v1229 = vmul.f32 %v1221, 0.70710677
  %v1230 = verf.f32.pop %v1226
  %v1231 = verf.f32.pop %v1227
  %v1232 = verf.f32.pop %v1228
  %v1233 = verf.f32.pop %v1229
  %v1234 = vadd.f32 %v1230, 1.0
  %v1235 = vadd.f32 %v1231, 1.0
  %v1236 = vadd.f32 %v1232, 1.0
  %v1237 = vadd.f32 %v1233, 1.0
  %v1238 = vmul.f32 %v1222, %v1234
  %v1239 = vmul.f32 %v1223, %v1235
  %v1240 = vmul.f32 %v1224, %v1236
  %v1241 = vmul.f32 %v1225, %v1237
  %v1242 = vpack.c.bf16 %v1239, %v1238
  %v1243 = vpack.c.bf16 %v1241, %v1240
  %s1244 = scalar_lea.vmem %s3, 384
  %v1245 = vld [vmem:[%s1244] sm:$0xff]
  %v1246 = vld [vmem:[%s1244 + $0x8] sm:$0xf]
  %v1247 = vld [vmem:[%s1244 + $0xc] sm:$0xff]
  %v1248 = vld [vmem:[%s1244 + $0x14] sm:$0xf]
  %v1249 = vld [vmem:[%s1244 + $0x18] sm:$0xff]
  %v1250 = vld [vmem:[%s1244 + $0x20] sm:$0xf]
  %v1251 = vld [vmem:[%s1244 + $0x24] sm:$0xff]
  %v1252 = vld [vmem:[%s1244 + $0x2c] sm:$0xf]
  %v1253 = vld [vmem:[%s1244 + $0x30] sm:$0xff]
  %v1254 = vld [vmem:[%s1244 + $0x38] sm:$0xf]
  %v1255 = vld [vmem:[%s1244 + $0x3c] sm:$0xff]
  %v1256 = vld [vmem:[%s1244 + $0x44] sm:$0xf]
  %v1257 = vld [vmem:[%s1244 + $0x48] sm:$0xff]
  %v1258 = vld [vmem:[%s1244 + $0x50] sm:$0xf]
  %v1259 = vld [vmem:[%s1244 + $0x54] sm:$0xff]
  %v1260 = vld [vmem:[%s1244 + $0x5c] sm:$0xf]
  %v1261 = vld [vmem:[%s1244 + $0x60] sm:$0xff]
  %v1262 = vld [vmem:[%s1244 + $0x68] sm:$0xf]
  %v1263 = vld [vmem:[%s1244 + $0x6c] sm:$0xff]
  %v1264 = vld [vmem:[%s1244 + $0x74] sm:$0xf]
  %v1265 = vld [vmem:[%s1244 + $0x78] sm:$0xff]
  %v1266 = vld [vmem:[%s1244 + $0x80] sm:$0xf]
  %v1267 = vld [vmem:[%s1244 + $0x84] sm:$0xff]
  %v1268 = vld [vmem:[%s1244 + $0x8c] sm:$0xf]
  %v1269 = vld [vmem:[%s1244 + $0x90] sm:$0xff]
  %v1270 = vld [vmem:[%s1244 + $0x98] sm:$0xf]
  %v1271 = vld [vmem:[%s1244 + $0x9c] sm:$0xff]
  %v1272 = vld [vmem:[%s1244 + $0xa4] sm:$0xf]
  %v1273 = vld [vmem:[%s1244 + $0xa8] sm:$0xff]
  %v1274 = vld [vmem:[%s1244 + $0xb0] sm:$0xf]
  %v1275 = vld [vmem:[%s1244 + $0xb4] sm:$0xff]
  %v1276 = vld [vmem:[%s1244 + $0xbc] sm:$0xf]
  %v1309 = vunpack.c.l.b16 %v1245
  %v1310 = vunpack.c.h.b16 %v1245
  %v1311 = vunpack.c.l.b16 %v1246
  %v1312 = vunpack.c.l.b16 %v1247
  %v1313 = vunpack.c.h.b16 %v1247
  %v1314 = vunpack.c.l.b16 %v1248
  %v1315 = vunpack.c.l.b16 %v1249
  %v1316 = vunpack.c.h.b16 %v1249
  %v1317 = vunpack.c.l.b16 %v1250
  %v1318 = vunpack.c.l.b16 %v1251
  %v1319 = vunpack.c.h.b16 %v1251
  %v1320 = vunpack.c.l.b16 %v1252
  %v1321 = vunpack.c.l.b16 %v1253
  %v1322 = vunpack.c.h.b16 %v1253
  %v1323 = vunpack.c.l.b16 %v1254
  %v1324 = vunpack.c.l.b16 %v1255
  %v1325 = vunpack.c.h.b16 %v1255
  %v1326 = vunpack.c.l.b16 %v1256
  %v1327 = vunpack.c.l.b16 %v1257
  %v1328 = vunpack.c.h.b16 %v1257
  %v1329 = vunpack.c.l.b16 %v1258
  %v1330 = vunpack.c.l.b16 %v1259
  %v1331 = vunpack.c.h.b16 %v1259
  %v1332 = vunpack.c.l.b16 %v1260
  %v1333 = vunpack.c.l.b16 %v1261
  %v1334 = vunpack.c.h.b16 %v1261
  %v1335 = vunpack.c.l.b16 %v1262
  %v1336 = vunpack.c.l.b16 %v1263
  %v1337 = vunpack.c.h.b16 %v1263
  %v1338 = vunpack.c.l.b16 %v1264
  %v1339 = vunpack.c.l.b16 %v1265
  %v1340 = vunpack.c.h.b16 %v1265
  %v1341 = vunpack.c.l.b16 %v1266
  %v1342 = vunpack.c.l.b16 %v1267
  %v1343 = vunpack.c.h.b16 %v1267
  %v1344 = vunpack.c.l.b16 %v1268
  %v1345 = vunpack.c.l.b16 %v1269
  %v1346 = vunpack.c.h.b16 %v1269
  %v1347 = vunpack.c.l.b16 %v1270
  %v1348 = vunpack.c.l.b16 %v1271
  %v1349 = vunpack.c.h.b16 %v1271
  %v1350 = vunpack.c.l.b16 %v1272
  %v1351 = vunpack.c.l.b16 %v1273
  %v1352 = vunpack.c.h.b16 %v1273
  %v1353 = vunpack.c.l.b16 %v1274
  %v1354 = vunpack.c.l.b16 %v1275
  %v1355 = vunpack.c.h.b16 %v1275
  %v1356 = vunpack.c.l.b16 %v1276
  %v1357 = vpack.c.b16 %v1312, %v1309
  %v1358 = vpack.c.b16 %v1313, %v1310
  %v1359 = vpack.c.b16 %v1314, %v1311
  %v1360 = vpack.c.b16 %v1318, %v1315
  %v1361 = vpack.c.b16 %v1319, %v1316
  %v1362 = vpack.c.b16 %v1320, %v1317
  %v1363 = vpack.c.b16 %v1324, %v1321
  %v1364 = vpack.c.b16 %v1325, %v1322
  %v1365 = vpack.c.b16 %v1326, %v1323
  %v1366 = vpack.c.b16 %v1330, %v1327
  %v1367 = vpack.c.b16 %v1331, %v1328
  %v1368 = vpack.c.b16 %v1332, %v1329
  %v1369 = vpack.c.b16 %v1336, %v1333
  %v1370 = vpack.c.b16 %v1337, %v1334
  %v1371 = vpack.c.b16 %v1338, %v1335
  %v1372 = vpack.c.b16 %v1342, %v1339
  %v1373 = vpack.c.b16 %v1343, %v1340
  %v1374 = vpack.c.b16 %v1344, %v1341
  %v1375 = vpack.c.b16 %v1348, %v1345
  %v1376 = vpack.c.b16 %v1349, %v1346
  %v1377 = vpack.c.b16 %v1350, %v1347
  %v1378 = vpack.c.b16 %v1354, %v1351
  %v1379 = vpack.c.b16 %v1355, %v1352
  %v1380 = vpack.c.b16 %v1356, %v1353
  %1405 = vmatprep.subr.bf16.mxu0 %v1358
  %1406 = vmatpush1.bf16.msra.mxu0 %v1357
  %1407 = vmatprep.subr.bf16.mxu0 %v1361
  %1408 = vmatpush1.bf16.msra.mxu0 %v1360
  %1409 = vmatprep.subr.bf16.mxu0 %v1364
  %1410 = vmatpush1.bf16.msra.mxu0 %v1363
  %1411 = vmatprep.subr.bf16.mxu0 %v1367
  %1412 = vmatpush1.bf16.msra.mxu0 %v1366
  %1413 = vmatprep.subr.bf16.mxu0 %v1370
  %1414 = vmatpush1.bf16.msra.mxu0 %v1369
  %1415 = vmatprep.subr.bf16.mxu0 %v1373
  %1416 = vmatpush1.bf16.msra.mxu0 %v1372
  %1417 = vmatprep.subr.bf16.mxu0 %v1376
  %1418 = vmatpush1.bf16.msra.mxu0 %v1375
  %1419 = vmatprep.subr.bf16.mxu0 %v1379
  %1420 = vmatpush1.bf16.msra.mxu0 %v1378
  %1421 = vmatprep.subr.bf16.mxu0 0
  %1422 = vmatpush1.bf16.msra.mxu0 0
  %1423 = vmatprep.subr.bf16.mxu0 0
  %1424 = vmatpush1.bf16.msra.mxu0 0
  %1425 = vmatprep.subr.bf16.mxu0 0
  %1426 = vmatpush1.bf16.msra.mxu0 0
  %1427 = vmatprep.subr.bf16.mxu0 0
  %1428 = vmatpush1.bf16.msra.mxu0 0
  %1429 = vmatprep.subr.bf16.mxu0 0
  %1430 = vmatpush1.bf16.msra.mxu0 0
  %1431 = vmatprep.subr.bf16.mxu0 0
  %1432 = vmatpush1.bf16.msra.mxu0 0
  %1433 = vmatprep.subr.bf16.mxu0 0
  %1434 = vmatpush1.bf16.msra.mxu0 0
  %1435 = vmatprep.subr.bf16.mxu0 0
  %1436 = vmatpush1.bf16.msra.mxu0 0
  %1437 = vmatprep.mubr.bf16.mxu0 0
  %1438 = vmatmul.mubr.bf16.gmra.mrb[0].mxu0 %v1242
  %v1439 = vpop.f32.mrb[0].mxu0
  %v1440 = vadd.f32 0.0, %v1439
  %v1441 = vpop.f32.mrb[0].mxu0
  %v1442 = vadd.f32 0.0, %v1441
  %v1443 = vpop.f32.mrb[0].mxu0
  %v1444 = vadd.f32 0.0, %v1443
  %v1445 = vpop.f32.mrb[0].mxu0
  %v1446 = vadd.f32 0.0, %v1445
  %1447 = vmatprep.mubr.bf16.mxu0 0
  %1448 = vmatmul.mubr.bf16.gmra.mrb[0].mxu0 %v1243
  %v1449 = vpop.f32.mrb[0].mxu0
  %v1450 = vadd.f32 0.0, %v1449
  %v1451 = vpop.f32.mrb[0].mxu0
  %v1452 = vadd.f32 0.0, %v1451
  %v1453 = vpop.f32.mrb[0].mxu0
  %v1454 = vadd.f32 0.0, %v1453
  %v1455 = vpop.f32.mrb[0].mxu0
  %v1456 = vadd.f32 0.0, %v1455
  %1457 = vdwg.mxu0
  %1458 = vmatprep.subr.bf16.mxu0 0
  %1459 = vmatpush1.bf16.msra.mxu0 %v1359
  %1460 = vmatprep.subr.bf16.mxu0 0
  %1461 = vmatpush1.bf16.msra.mxu0 %v1362
  %1462 = vmatprep.subr.bf16.mxu0 0
  %1463 = vmatpush1.bf16.msra.mxu0 %v1365
  %1464 = vmatprep.subr.bf16.mxu0 0
  %1465 = vmatpush1.bf16.msra.mxu0 %v1368
  %1466 = vmatprep.subr.bf16.mxu0 0
  %1467 = vmatpush1.bf16.msra.mxu0 %v1371
  %1468 = vmatprep.subr.bf16.mxu0 0
  %1469 = vmatpush1.bf16.msra.mxu0 %v1374
  %1470 = vmatprep.subr.bf16.mxu0 0
  %1471 = vmatpush1.bf16.msra.mxu0 %v1377
  %1472 = vmatprep.subr.bf16.mxu0 0
  %1473 = vmatpush1.bf16.msra.mxu0 %v1380
  %1474 = vmatprep.subr.bf16.mxu0 0
  %1475 = vmatpush1.bf16.msra.mxu0 0
  %1476 = vmatprep.subr.bf16.mxu0 0
  %1477 = vmatpush1.bf16.msra.mxu0 0
  %1478 = vmatprep.subr.bf16.mxu0 0
  %1479 = vmatpush1.bf16.msra.mxu0 0
  %1480 = vmatprep.subr.bf16.mxu0 0
  %1481 = vmatpush1.bf16.msra.mxu0 0
  %1482 = vmatprep.subr.bf16.mxu0 0
  %1483 = vmatpush1.bf16.msra.mxu0 0
  %1484 = vmatprep.subr.bf16.mxu0 0
  %1485 = vmatpush1.bf16.msra.mxu0 0
  %1486 = vmatprep.subr.bf16.mxu0 0
  %1487 = vmatpush1.bf16.msra.mxu0 0
  %1488 = vmatprep.subr.bf16.mxu0 0
  %1489 = vmatpush1.bf16.msra.mxu0 0
  %1490 = vmatprep.mubr.bf16.mxu0 0
  %1491 = vmatmul.mubr.bf16.gmra.mrb[0].mxu0 %v1242
  %v1492 = vpop.f32.mrb[0].mxu0
  %v1493 = vadd.f32 0.0, %v1492
  %v1494 = vpop.f32.mrb[0].mxu0
  %v1495 = vpop.f32.mrb[0].mxu0
  %v1496 = vadd.f32 0.0, %v1495
  %v1497 = vpop.f32.mrb[0].mxu0
  %1498 = vmatprep.mubr.bf16.mxu0 0
  %1499 = vmatmul.mubr.bf16.gmra.mrb[0].mxu0 %v1243
  %v1500 = vpop.f32.mrb[0].mxu0
  %v1501 = vadd.f32 0.0, %v1500
  %v1502 = vpop.f32.mrb[0].mxu0
  %v1503 = vpop.f32.mrb[0].mxu0
  %v1504 = vadd.f32 0.0, %v1503
  %v1505 = vpop.f32.mrb[0].mxu0
  %1506 = vdwg.mxu0
  %v1511 = vrot.slane %v1440, 7
  %v1512 = vrot.slane %v1444, 7
  %v1513 = vsel %vm648, %v1511, %v1512
  %v1514 = vrot.slane %v1450, 7
  %v1515 = vsel %vm648, %v1512, %v1514
  %v1516 = vrot.slane %v1454, 7
  %v1517 = vsel %vm648, %v1514, %v1516
  %v1522 = vsel %vm648, 0.0, %v1511
  %v1523 = vsel %vm661, 0.0, %v1522
  %v1524 = vsel %vm662, 0.0, %v1513
  %v1525 = vsel %vm663, 0.0, %v1515
  %v1526 = vsel %vm664, 0.0, %v1517
  %v1531 = vrot.slane %v1493, 1
  %v1532 = vrot.slane %v1496, 1
  %v1533 = vsel %vm673, %v1531, %v1532
  %v1534 = vrot.slane %v1501, 1
  %v1535 = vsel %vm673, %v1532, %v1534
  %v1536 = vrot.slane %v1504, 1
  %v1537 = vsel %vm673, %v1534, %v1536
  %v1542 = vsel %vm673, %v1536, 0.0
  %v1543 = vsel %vm686, 0.0, %v1533
  %v1544 = vsel %vm687, 0.0, %v1535
  %v1545 = vsel %vm688, 0.0, %v1537
  %v1546 = vsel %vm689, 0.0, %v1542
  %v1547 = vadd.f32 %v1523, %v1442
  %v1548 = vadd.f32 %v1524, %v1446
  %v1549 = vadd.f32 %v1525, %v1452
  %v1550 = vadd.f32 %v1526, %v1456
  %v1551 = vadd.f32 %v1547, %v1543
  %v1552 = vadd.f32 %v1548, %v1544
  %v1553 = vadd.f32 %v1549, %v1545
  %v1554 = vadd.f32 %v1550, %v1546
  %s1555 = scalar_lea.vmem %s4, 2
  %v1556 = vld [vmem:[%s1555] sm:$0x1]
  %v1558 = vlaneseq
  %v1559 = vshrl.u32 %v1558, 7
  %v1560 = vsub.s32 0, %v1559
  %v1561 = vrot.slane %v1556, %v1560
  %v1563 = vadd.f32 %v1551, %v1561
  %v1564 = vadd.f32 %v1552, %v1561
  %v1565 = vadd.f32 %v1553, %v1561
  %v1566 = vadd.f32 %v1554, %v1561
  %v1567 = vadd.f32 %v1563, %v1564
  %v1568 = vadd.f32 %v1567, %v1565
  %v1569 = vadd.f32 %v1568, %v1566
  %v1570 = vrot.slane %v1569, 4
  %v1571 = vadd.f32 %v1569, %v1570
  %v1572 = vrot.slane %v1571, 2
  %v1573 = vadd.f32 %v1571, %v1572
  %v1574 = vrot.slane %v1573, 1
  %v1575 = vadd.f32 %v1573, %v1574
  %1576 = vrot.lane.b32.xlu0 %v1575, 8
  %v1577 = vpop.permute.xlu0 %1576
  %v1578 = vadd.f32 %v1575, %v1577
  %1579 = vrot.lane.b32.xlu0 %v1578, 16
  %v1580 = vpop.permute.xlu0 %1579
  %v1581 = vadd.f32 %v1578, %v1580
  %1582 = vrot.lane.b32.xlu0 %v1581, 32
  %v1583 = vpop.permute.xlu0 %1582
  %v1584 = vadd.f32 %v1581, %v1583
  %1585 = vrot.lane.b32.xlu0 %v1584, 64
  %v1586 = vpop.permute.xlu0 %1585
  %v1587 = vadd.f32 %v1584, %v1586
  %v1588 = vmul.f32 %v1587, 0.001953125
  %v1589 = vlaneseq
  %v1590 = vshrl.u32 %v1589, 7
  %v1591 = vsub.s32 0, %v1590
  %v1592 = vrot.slane %v1588, %v1591
  %v1593 = vsub.f32 %v1563, %v1592
  %v1594 = vsub.f32 %v1564, %v1592
  %v1595 = vsub.f32 %v1565, %v1592
  %v1596 = vsub.f32 %v1566, %v1592
  %v1597 = vmul.f32 %v1593, %v1593
  %v1598 = vmul.f32 %v1594, %v1594
  %v1599 = vmul.f32 %v1595, %v1595
  %v1600 = vmul.f32 %v1596, %v1596
  %v1601 = vadd.f32 %v1597, %v1598
  %v1602 = vadd.f32 %v1601, %v1599
  %v1603 = vadd.f32 %v1602, %v1600
  %v1604 = vrot.slane %v1603, 4
  %v1605 = vadd.f32 %v1603, %v1604
  %v1606 = vrot.slane %v1605, 2
  %v1607 = vadd.f32 %v1605, %v1606
  %v1608 = vrot.slane %v1607, 1
  %v1609 = vadd.f32 %v1607, %v1608
  %1610 = vrot.lane.b32.xlu0 %v1609, 8
  %v1611 = vpop.permute.xlu0 %1610
  %v1612 = vadd.f32 %v1609, %v1611
  %1613 = vrot.lane.b32.xlu0 %v1612, 16
  %v1614 = vpop.permute.xlu0 %1613
  %v1615 = vadd.f32 %v1612, %v1614
  %1616 = vrot.lane.b32.xlu0 %v1615, 32
  %v1617 = vpop.permute.xlu0 %1616
  %v1618 = vadd.f32 %v1615, %v1617
  %1619 = vrot.lane.b32.xlu0 %v1618, 64
  %v1620 = vpop.permute.xlu0 %1619
  %v1621 = vadd.f32 %v1618, %v1620
  %v1622 = vmul.f32 %v1621, 0.001953125
  %s1623 = scalar_lea.vmem %s5, 2
  %v1624 = vld [vmem:[%s1623] sm:$0x1]
  %v1625 = vadd.f32 %v1622, 1e-05
  %v1626 = vrsqrt.pop %v1625
  %v1627 = vmul.f32 %v1624, %v1626
  %v1629 = vlaneseq
  %v1630 = vshrl.u32 %v1629, 7
  %v1631 = vsub.s32 0, %v1630
  %v1632 = vrot.slane %v1627, %v1631
  %v1634 = vmul.f32 %v1593, %v1632
  %v1635 = vmul.f32 %v1594, %v1632
  %v1636 = vmul.f32 %v1595, %v1632
  %v1637 = vmul.f32 %v1596, %v1632
  %s1638 = scalar_lea.vmem %s6, 2
  %v1639 = vld [vmem:[%s1638] sm:$0x1]
  %v1641 = vlaneseq
  %v1642 = vshrl.u32 %v1641, 7
  %v1643 = vsub.s32 0, %v1642
  %v1644 = vrot.slane %v1639, %v1643
  %v1646 = vadd.f32 %v1634, %v1644
  %v1647 = vadd.f32 %v1635, %v1644
  %v1648 = vadd.f32 %v1636, %v1644
  %v1649 = vadd.f32 %v1637, %v1644
  %v1650 = vmul.f32 %v1646, 0.5
  %v1651 = vmul.f32 %v1647, 0.5
  %v1652 = vmul.f32 %v1648, 0.5
  %v1653 = vmul.f32 %v1649, 0.5
  %v1654 = vmul.f32 %v1646, 0.70710677
  %v1655 = vmul.f32 %v1647, 0.70710677
  %v1656 = vmul.f32 %v1648, 0.70710677
  %v1657 = vmul.f32 %v1649, 0.70710677
  %v1658 = verf.f32.pop %v1654
  %v1659 = verf.f32.pop %v1655
  %v1660 = verf.f32.pop %v1656
  %v1661 = verf.f32.pop %v1657
  %v1662 = vadd.f32 %v1658, 1.0
  %v1663 = vadd.f32 %v1659, 1.0
  %v1664 = vadd.f32 %v1660, 1.0
  %v1665 = vadd.f32 %v1661, 1.0
  %v1666 = vmul.f32 %v1650, %v1662
  %v1667 = vmul.f32 %v1651, %v1663
  %v1668 = vmul.f32 %v1652, %v1664
  %v1669 = vmul.f32 %v1653, %v1665
  %v1670 = vpack.c.bf16 %v1667, %v1666
  %v1671 = vpack.c.bf16 %v1669, %v1668
  %s1672 = scalar_lea.vmem %s3, 576
  %v1673 = vld [vmem:[%s1672] sm:$0xff]
  %v1674 = vld [vmem:[%s1672 + $0x8] sm:$0xf]
  %v1675 = vld [vmem:[%s1672 + $0xc] sm:$0xff]
  %v1676 = vld [vmem:[%s1672 + $0x14] sm:$0xf]
  %v1677 = vld [vmem:[%s1672 + $0x18] sm:$0xff]
  %v1678 = vld [vmem:[%s1672 + $0x20] sm:$0xf]
  %v1679 = vld [vmem:[%s1672 + $0x24] sm:$0xff]
  %v1680 = vld [vmem:[%s1672 + $0x2c] sm:$0xf]
  %v1681 = vld [vmem:[%s1672 + $0x30] sm:$0xff]
  %v1682 = vld [vmem:[%s1672 + $0x38] sm:$0xf]
  %v1683 = vld [vmem:[%s1672 + $0x3c] sm:$0xff]
  %v1684 = vld [vmem:[%s1672 + $0x44] sm:$0xf]
  %v1685 = vld [vmem:[%s1672 + $0x48] sm:$0xff]
  %v1686 = vld [vmem:[%s1672 + $0x50] sm:$0xf]
  %v1687 = vld [vmem:[%s1672 + $0x54] sm:$0xff]
  %v1688 = vld [vmem:[%s1672 + $0x5c] sm:$0xf]
  %v1689 = vld [vmem:[%s1672 + $0x60] sm:$0xff]
  %v1690 = vld [vmem:[%s1672 + $0x68] sm:$0xf]
  %v1691 = vld [vmem:[%s1672 + $0x6c] sm:$0xff]
  %v1692 = vld [vmem:[%s1672 + $0x74] sm:$0xf]
  %v1693 = vld [vmem:[%s1672 + $0x78] sm:$0xff]
  %v1694 = vld [vmem:[%s1672 + $0x80] sm:$0xf]
  %v1695 = vld [vmem:[%s1672 + $0x84] sm:$0xff]
  %v1696 = vld [vmem:[%s1672 + $0x8c] sm:$0xf]
  %v1697 = vld [vmem:[%s1672 + $0x90] sm:$0xff]
  %v1698 = vld [vmem:[%s1672 + $0x98] sm:$0xf]
  %v1699 = vld [vmem:[%s1672 + $0x9c] sm:$0xff]
  %v1700 = vld [vmem:[%s1672 + $0xa4] sm:$0xf]
  %v1701 = vld [vmem:[%s1672 + $0xa8] sm:$0xff]
  %v1702 = vld [vmem:[%s1672 + $0xb0] sm:$0xf]
  %v1703 = vld [vmem:[%s1672 + $0xb4] sm:$0xff]
  %v1704 = vld [vmem:[%s1672 + $0xbc] sm:$0xf]
  %v1737 = vunpack.c.l.b16 %v1673
  %v1738 = vunpack.c.h.b16 %v1673
  %v1739 = vunpack.c.l.b16 %v1674
  %v1740 = vunpack.c.l.b16 %v1675
  %v1741 = vunpack.c.h.b16 %v1675
  %v1742 = vunpack.c.l.b16 %v1676
  %v1743 = vunpack.c.l.b16 %v1677
  %v1744 = vunpack.c.h.b16 %v1677
  %v1745 = vunpack.c.l.b16 %v1678
  %v1746 = vunpack.c.l.b16 %v1679
  %v1747 = vunpack.c.h.b16 %v1679
  %v1748 = vunpack.c.l.b16 %v1680
  %v1749 = vunpack.c.l.b16 %v1681
  %v1750 = vunpack.c.h.b16 %v1681
  %v1751 = vunpack.c.l.b16 %v1682
  %v1752 = vunpack.c.l.b16 %v1683
  %v1753 = vunpack.c.h.b16 %v1683
  %v1754 = vunpack.c.l.b16 %v1684
  %v1755 = vunpack.c.l.b16 %v1685
  %v1756 = vunpack.c.h.b16 %v1685
  %v1757 = vunpack.c.l.b16 %v1686
  %v1758 = vunpack.c.l.b16 %v1687
  %v1759 = vunpack.c.h.b16 %v1687
  %v1760 = vunpack.c.l.b16 %v1688
  %v1761 = vunpack.c.l.b16 %v1689
  %v1762 = vunpack.c.h.b16 %v1689
  %v1763 = vunpack.c.l.b16 %v1690
  %v1764 = vunpack.c.l.b16 %v1691
  %v1765 = vunpack.c.h.b16 %v1691
  %v1766 = vunpack.c.l.b16 %v1692
  %v1767 = vunpack.c.l.b16 %v1693
  %v1768 = vunpack.c.h.b16 %v1693
  %v1769 = vunpack.c.l.b16 %v1694
  %v1770 = vunpack.c.l.b16 %v1695
  %v1771 = vunpack.c.h.b16 %v1695
  %v1772 = vunpack.c.l.b16 %v1696
  %v1773 = vunpack.c.l.b16 %v1697
  %v1774 = vunpack.c.h.b16 %v1697
  %v1775 = vunpack.c.l.b16 %v1698
  %v1776 = vunpack.c.l.b16 %v1699
  %v1777 = vunpack.c.h.b16 %v1699
  %v1778 = vunpack.c.l.b16 %v1700
  %v1779 = vunpack.c.l.b16 %v1701
  %v1780 = vunpack.c.h.b16 %v1701
  %v1781 = vunpack.c.l.b16 %v1702
  %v1782 = vunpack.c.l.b16 %v1703
  %v1783 = vunpack.c.h.b16 %v1703
  %v1784 = vunpack.c.l.b16 %v1704
  %v1785 = vpack.c.b16 %v1740, %v1737
  %v1786 = vpack.c.b16 %v1741, %v1738
  %v1787 = vpack.c.b16 %v1742, %v1739
  %v1788 = vpack.c.b16 %v1746, %v1743
  %v1789 = vpack.c.b16 %v1747, %v1744
  %v1790 = vpack.c.b16 %v1748, %v1745
  %v1791 = vpack.c.b16 %v1752, %v1749
  %v1792 = vpack.c.b16 %v1753, %v1750
  %v1793 = vpack.c.b16 %v1754, %v1751
  %v1794 = vpack.c.b16 %v1758, %v1755
  %v1795 = vpack.c.b16 %v1759, %v1756
  %v1796 = vpack.c.b16 %v1760, %v1757
  %v1797 = vpack.c.b16 %v1764, %v1761
  %v1798 = vpack.c.b16 %v1765, %v1762
  %v1799 = vpack.c.b16 %v1766, %v1763
  %v1800 = vpack.c.b16 %v1770, %v1767
  %v1801 = vpack.c.b16 %v1771, %v1768
  %v1802 = vpack.c.b16 %v1772, %v1769
  %v1803 = vpack.c.b16 %v1776, %v1773
  %v1804 = vpack.c.b16 %v1777, %v1774
  %v1805 = vpack.c.b16 %v1778, %v1775
  %v1806 = vpack.c.b16 %v1782, %v1779
  %v1807 = vpack.c.b16 %v1783, %v1780
  %v1808 = vpack.c.b16 %v1784, %v1781
  %1833 = vmatprep.subr.bf16.mxu0 %v1786
  %1834 = vmatpush1.bf16.msra.mxu0 %v1785
  %1835 = vmatprep.subr.bf16.mxu0 %v1789
  %1836 = vmatpush1.bf16.msra.mxu0 %v1788
  %1837 = vmatprep.subr.bf16.mxu0 %v1792
  %1838 = vmatpush1.bf16.msra.mxu0 %v1791
  %1839 = vmatprep.subr.bf16.mxu0 %v1795
  %1840 = vmatpush1.bf16.msra.mxu0 %v1794
  %1841 = vmatprep.subr.bf16.mxu0 %v1798
  %1842 = vmatpush1.bf16.msra.mxu0 %v1797
  %1843 = vmatprep.subr.bf16.mxu0 %v1801
  %1844 = vmatpush1.bf16.msra.mxu0 %v1800
  %1845 = vmatprep.subr.bf16.mxu0 %v1804
  %1846 = vmatpush1.bf16.msra.mxu0 %v1803
  %1847 = vmatprep.subr.bf16.mxu0 %v1807
  %1848 = vmatpush1.bf16.msra.mxu0 %v1806
  %1849 = vmatprep.subr.bf16.mxu0 0
  %1850 = vmatpush1.bf16.msra.mxu0 0
  %1851 = vmatprep.subr.bf16.mxu0 0
  %1852 = vmatpush1.bf16.msra.mxu0 0
  %1853 = vmatprep.subr.bf16.mxu0 0
  %1854 = vmatpush1.bf16.msra.mxu0 0
  %1855 = vmatprep.subr.bf16.mxu0 0
  %1856 = vmatpush1.bf16.msra.mxu0 0
  %1857 = vmatprep.subr.bf16.mxu0 0
  %1858 = vmatpush1.bf16.msra.mxu0 0
  %1859 = vmatprep.subr.bf16.mxu0 0
  %1860 = vmatpush1.bf16.msra.mxu0 0
  %1861 = vmatprep.subr.bf16.mxu0 0
  %1862 = vmatpush1.bf16.msra.mxu0 0
  %1863 = vmatprep.subr.bf16.mxu0 0
  %1864 = vmatpush1.bf16.msra.mxu0 0
  %1865 = vmatprep.mubr.bf16.mxu0 0
  %1866 = vmatmul.mubr.bf16.gmra.mrb[0].mxu0 %v1670
  %v1867 = vpop.f32.mrb[0].mxu0
  %v1868 = vadd.f32 0.0, %v1867
  %v1869 = vpop.f32.mrb[0].mxu0
  %v1870 = vadd.f32 0.0, %v1869
  %v1871 = vpop.f32.mrb[0].mxu0
  %v1872 = vadd.f32 0.0, %v1871
  %v1873 = vpop.f32.mrb[0].mxu0
  %v1874 = vadd.f32 0.0, %v1873
  %1875 = vmatprep.mubr.bf16.mxu0 0
  %1876 = vmatmul.mubr.bf16.gmra.mrb[0].mxu0 %v1671
  %v1877 = vpop.f32.mrb[0].mxu0
  %v1878 = vadd.f32 0.0, %v1877
  %v1879 = vpop.f32.mrb[0].mxu0
  %v1880 = vadd.f32 0.0, %v1879
  %v1881 = vpop.f32.mrb[0].mxu0
  %v1882 = vadd.f32 0.0, %v1881
  %v1883 = vpop.f32.mrb[0].mxu0
  %v1884 = vadd.f32 0.0, %v1883
  %1885 = vdwg.mxu0
  %1886 = vmatprep.subr.bf16.mxu0 0
  %1887 = vmatpush1.bf16.msra.mxu0 %v1787
  %1888 = vmatprep.subr.bf16.mxu0 0
  %1889 = vmatpush1.bf16.msra.mxu0 %v1790
  %1890 = vmatprep.subr.bf16.mxu0 0
  %1891 = vmatpush1.bf16.msra.mxu0 %v1793
  %1892 = vmatprep.subr.bf16.mxu0 0
  %1893 = vmatpush1.bf16.msra.mxu0 %v1796
  %1894 = vmatprep.subr.bf16.mxu0 0
  %1895 = vmatpush1.bf16.msra.mxu0 %v1799
  %1896 = vmatprep.subr.bf16.mxu0 0
  %1897 = vmatpush1.bf16.msra.mxu0 %v1802
  %1898 = vmatprep.subr.bf16.mxu0 0
  %1899 = vmatpush1.bf16.msra.mxu0 %v1805
  %1900 = vmatprep.subr.bf16.mxu0 0
  %1901 = vmatpush1.bf16.msra.mxu0 %v1808
  %1902 = vmatprep.subr.bf16.mxu0 0
  %1903 = vmatpush1.bf16.msra.mxu0 0
  %1904 = vmatprep.subr.bf16.mxu0 0
  %1905 = vmatpush1.bf16.msra.mxu0 0
  %1906 = vmatprep.subr.bf16.mxu0 0
  %1907 = vmatpush1.bf16.msra.mxu0 0
  %1908 = vmatprep.subr.bf16.mxu0 0
  %1909 = vmatpush1.bf16.msra.mxu0 0
  %1910 = vmatprep.subr.bf16.mxu0 0
  %1911 = vmatpush1.bf16.msra.mxu0 0
  %1912 = vmatprep.subr.bf16.mxu0 0
  %1913 = vmatpush1.bf16.msra.mxu0 0
  %1914 = vmatprep.subr.bf16.mxu0 0
  %1915 = vmatpush1.bf16.msra.mxu0 0
  %1916 = vmatprep.subr.bf16.mxu0 0
  %1917 = vmatpush1.bf16.msra.mxu0 0
  %1918 = vmatprep.mubr.bf16.mxu0 0
  %1919 = vmatmul.mubr.bf16.gmra.mrb[0].mxu0 %v1670
  %v1920 = vpop.f32.mrb[0].mxu0
  %v1921 = vadd.f32 0.0, %v1920
  %v1922 = vpop.f32.mrb[0].mxu0
  %v1923 = vpop.f32.mrb[0].mxu0
  %v1924 = vadd.f32 0.0, %v1923
  %v1925 = vpop.f32.mrb[0].mxu0
  %1926 = vmatprep.mubr.bf16.mxu0 0
  %1927 = vmatmul.mubr.bf16.gmra.mrb[0].mxu0 %v1671
  %v1928 = vpop.f32.mrb[0].mxu0
  %v1929 = vadd.f32 0.0, %v1928
  %v1930 = vpop.f32.mrb[0].mxu0
  %v1931 = vpop.f32.mrb[0].mxu0
  %v1932 = vadd.f32 0.0, %v1931
  %v1933 = vpop.f32.mrb[0].mxu0
  %1934 = vdwg.mxu0
  %v1939 = vrot.slane %v1868, 7
  %v1940 = vrot.slane %v1872, 7
  %v1941 = vsel %vm648, %v1939, %v1940
  %v1942 = vrot.slane %v1878, 7
  %v1943 = vsel %vm648, %v1940, %v1942
  %v1944 = vrot.slane %v1882, 7
  %v1945 = vsel %vm648, %v1942, %v1944
  %v1950 = vsel %vm648, 0.0, %v1939
  %v1951 = vsel %vm661, 0.0, %v1950
  %v1952 = vsel %vm662, 0.0, %v1941
  %v1953 = vsel %vm663, 0.0, %v1943
  %v1954 = vsel %vm664, 0.0, %v1945
  %v1959 = vrot.slane %v1921, 1
  %v1960 = vrot.slane %v1924, 1
  %v1961 = vsel %vm673, %v1959, %v1960
  %v1962 = vrot.slane %v1929, 1
  %v1963 = vsel %vm673, %v1960, %v1962
  %v1964 = vrot.slane %v1932, 1
  %v1965 = vsel %vm673, %v1962, %v1964
  %v1970 = vsel %vm673, %v1964, 0.0
  %v1971 = vsel %vm686, 0.0, %v1961
  %v1972 = vsel %vm687, 0.0, %v1963
  %v1973 = vsel %vm688, 0.0, %v1965
  %v1974 = vsel %vm689, 0.0, %v1970
  %v1975 = vadd.f32 %v1951, %v1870
  %v1976 = vadd.f32 %v1952, %v1874
  %v1977 = vadd.f32 %v1953, %v1880
  %v1978 = vadd.f32 %v1954, %v1884
  %v1979 = vadd.f32 %v1975, %v1971
  %v1980 = vadd.f32 %v1976, %v1972
  %v1981 = vadd.f32 %v1977, %v1973
  %v1982 = vadd.f32 %v1978, %v1974
  %s1983 = scalar_lea.vmem %s4, 3
  %v1984 = vld [vmem:[%s1983] sm:$0x1]
  %v1986 = vlaneseq
  %v1987 = vshrl.u32 %v1986, 7
  %v1988 = vsub.s32 0, %v1987
  %v1989 = vrot.slane %v1984, %v1988
  %v1991 = vadd.f32 %v1979, %v1989
  %v1992 = vadd.f32 %v1980, %v1989
  %v1993 = vadd.f32 %v1981, %v1989
  %v1994 = vadd.f32 %v1982, %v1989
  %v1995 = vadd.f32 %v1991, %v1992
  %v1996 = vadd.f32 %v1995, %v1993
  %v1997 = vadd.f32 %v1996, %v1994
  %v1998 = vrot.slane %v1997, 4
  %v1999 = vadd.f32 %v1997, %v1998
  %v2000 = vrot.slane %v1999, 2
  %v2001 = vadd.f32 %v1999, %v2000
  %v2002 = vrot.slane %v2001, 1
  %v2003 = vadd.f32 %v2001, %v2002
  %2004 = vrot.lane.b32.xlu0 %v2003, 8
  %v2005 = vpop.permute.xlu0 %2004
  %v2006 = vadd.f32 %v2003, %v2005
  %2007 = vrot.lane.b32.xlu0 %v2006, 16
  %v2008 = vpop.permute.xlu0 %2007
  %v2009 = vadd.f32 %v2006, %v2008
  %2010 = vrot.lane.b32.xlu0 %v2009, 32
  %v2011 = vpop.permute.xlu0 %2010
  %v2012 = vadd.f32 %v2009, %v2011
  %2013 = vrot.lane.b32.xlu0 %v2012, 64
  %v2014 = vpop.permute.xlu0 %2013
  %v2015 = vadd.f32 %v2012, %v2014
  %v2016 = vmul.f32 %v2015, 0.001953125
  %v2017 = vlaneseq
  %v2018 = vshrl.u32 %v2017, 7
  %v2019 = vsub.s32 0, %v2018
  %v2020 = vrot.slane %v2016, %v2019
  %v2021 = vsub.f32 %v1991, %v2020
  %v2022 = vsub.f32 %v1992, %v2020
  %v2023 = vsub.f32 %v1993, %v2020
  %v2024 = vsub.f32 %v1994, %v2020
  %v2025 = vmul.f32 %v2021, %v2021
  %v2026 = vmul.f32 %v2022, %v2022
  %v2027 = vmul.f32 %v2023, %v2023
  %v2028 = vmul.f32 %v2024, %v2024
  %v2029 = vadd.f32 %v2025, %v2026
  %v2030 = vadd.f32 %v2029, %v2027
  %v2031 = vadd.f32 %v2030, %v2028
  %v2032 = vrot.slane %v2031, 4
  %v2033 = vadd.f32 %v2031, %v2032
  %v2034 = vrot.slane %v2033, 2
  %v2035 = vadd.f32 %v2033, %v2034
  %v2036 = vrot.slane %v2035, 1
  %v2037 = vadd.f32 %v2035, %v2036
  %2038 = vrot.lane.b32.xlu0 %v2037, 8
  %v2039 = vpop.permute.xlu0 %2038
  %v2040 = vadd.f32 %v2037, %v2039
  %2041 = vrot.lane.b32.xlu0 %v2040, 16
  %v2042 = vpop.permute.xlu0 %2041
  %v2043 = vadd.f32 %v2040, %v2042
  %2044 = vrot.lane.b32.xlu0 %v2043, 32
  %v2045 = vpop.permute.xlu0 %2044
  %v2046 = vadd.f32 %v2043, %v2045
  %2047 = vrot.lane.b32.xlu0 %v2046, 64
  %v2048 = vpop.permute.xlu0 %2047
  %v2049 = vadd.f32 %v2046, %v2048
  %v2050 = vmul.f32 %v2049, 0.001953125
  %s2051 = scalar_lea.vmem %s5, 3
  %v2052 = vld [vmem:[%s2051] sm:$0x1]
  %v2053 = vadd.f32 %v2050, 1e-05
  %v2054 = vrsqrt.pop %v2053
  %v2055 = vmul.f32 %v2052, %v2054
  %v2057 = vlaneseq
  %v2058 = vshrl.u32 %v2057, 7
  %v2059 = vsub.s32 0, %v2058
  %v2060 = vrot.slane %v2055, %v2059
  %v2062 = vmul.f32 %v2021, %v2060
  %v2063 = vmul.f32 %v2022, %v2060
  %v2064 = vmul.f32 %v2023, %v2060
  %v2065 = vmul.f32 %v2024, %v2060
  %s2066 = scalar_lea.vmem %s6, 3
  %v2067 = vld [vmem:[%s2066] sm:$0x1]
  %v2069 = vlaneseq
  %v2070 = vshrl.u32 %v2069, 7
  %v2071 = vsub.s32 0, %v2070
  %v2072 = vrot.slane %v2067, %v2071
  %v2074 = vadd.f32 %v2062, %v2072
  %v2075 = vadd.f32 %v2063, %v2072
  %v2076 = vadd.f32 %v2064, %v2072
  %v2077 = vadd.f32 %v2065, %v2072
  %v2078 = vmul.f32 %v2074, 0.5
  %v2079 = vmul.f32 %v2075, 0.5
  %v2080 = vmul.f32 %v2076, 0.5
  %v2081 = vmul.f32 %v2077, 0.5
  %v2082 = vmul.f32 %v2074, 0.70710677
  %v2083 = vmul.f32 %v2075, 0.70710677
  %v2084 = vmul.f32 %v2076, 0.70710677
  %v2085 = vmul.f32 %v2077, 0.70710677
  %v2086 = verf.f32.pop %v2082
  %v2087 = verf.f32.pop %v2083
  %v2088 = verf.f32.pop %v2084
  %v2089 = verf.f32.pop %v2085
  %v2090 = vadd.f32 %v2086, 1.0
  %v2091 = vadd.f32 %v2087, 1.0
  %v2092 = vadd.f32 %v2088, 1.0
  %v2093 = vadd.f32 %v2089, 1.0
  %v2094 = vmul.f32 %v2078, %v2090
  %v2095 = vmul.f32 %v2079, %v2091
  %v2096 = vmul.f32 %v2080, %v2092
  %v2097 = vmul.f32 %v2081, %v2093
  %2098 = vst [vmem:[%s7] sm:$0xff] %v2094
  %2099 = vst [vmem:[%s7 + $0x8] sm:$0xff] %v2095
  %2100 = vst [vmem:[%s7 + $0x10] sm:$0xff] %v2096
  %2101 = vst [vmem:[%s7 + $0x18] sm:$0xff] %v2097
  // Predicated region
  $region30: #{unet_up_forward.1} parent=0 // pred_check
    _
  $region31: #{unet_up_forward.1} parent=0 // pred_check_branch
    %2103 = sbr.rel (0) target = $region33
  $region32: #{unet_up_forward.1} parent=0 // pred_region
    _
  $region33: #{unet_up_forward.1} parent=0 // pred_fallthru
    _
  // Predicated region
  $region34: #{unet_up_forward.1} parent=0 // pred_check
    _
  $region35: #{unet_up_forward.1} parent=0 // pred_check_branch
    %2105 = sbr.rel (0) target = $region37
  $region36: #{unet_up_forward.1} parent=0 // pred_region
    _
  $region37: #{unet_up_forward.1} parent=0 // pred_fallthru
    _

</llo_original>
